<compile_context>
chip_gen: v7x
topology: tpu7x:2x2x1
jax: 0.10.0
libtpu: 0.0.40
codegen_flags: <defaults>
</compile_context>

<pallas_src>
import jax
import jax.numpy as jnp
from jax.experimental import pallas as pl
from jax.experimental.pallas import tpu as pltpu

# ----------------------------- config -------------------------------------
VOCAB = 64          # len(config.s2s_input)
EMBED_DIM = 32      # config.embedding_dim
HIDDEN = 32         # config.encoder_hidden_size
NUM_LAYERS = 1      # config.encoder_num_layers
NUM_DIRS = 1        # config.encoder_bidirectional = False
SEQ_LEN = 8         # config.seq_len
BATCH = 4
PAD_IDX = 0         # config.padding_index


# ----------------------------- kernel --------------------------------------
def encoder_gru_kernel(emb_ref,                                # (S*Bp, D) f32
                       len_ref,                                # (Bp, 1)   i32
                       wih_r_ref, wih_z_ref, wih_n_ref,        # (D, H)    f32
                       whh_r_ref, whh_z_ref, whh_n_ref,        # (H, H)    f32
                       bi_r_ref, bi_z_ref, bi_n_ref,           # (1, H)    f32
                       bhn_ref,                                # (1, H)    f32
                       out_ref,                                # (Bp, S*H) f32
                       hid_ref):                               # (1, Bp, H) f32
    B, H = hid_ref.shape[1], hid_ref.shape[2]
    S = out_ref.shape[1] // H

    # ---- loop-invariant work (hoisted off the serial recurrence) ----------
    # Input-gate projections for ALL timesteps, one batched MXU matmul per
    # gate (each result lane-0 aligned).  b_hr / b_hz already folded in.
    emb = emb_ref[...]                                           # (S*B, D)
    gi_r_all = jnp.dot(emb, wih_r_ref[...],
                       preferred_element_type=jnp.float32) + bi_r_ref[...]
    gi_z_all = jnp.dot(emb, wih_z_ref[...],
                       preferred_element_type=jnp.float32) + bi_z_ref[...]
    gi_n_all = jnp.dot(emb, wih_n_ref[...],
                       preferred_element_type=jnp.float32) + bi_n_ref[...]

    whh_r = whh_r_ref[...]                                       # (H, H) f32
    whh_z = whh_z_ref[...]
    whh_n = whh_n_ref[...]
    bhn = jnp.broadcast_to(bhn_ref[...], (B, H))                 # broadcast once
    lens = len_ref[...]                                          # (B, 1) i32

    h = jnp.zeros((B, H), jnp.float32)
    outs = []

    # ---- recurrence: fully unrolled (S is static) --------------------------
    # Per step: three small (B,H)@(H,H) f32 dots (results at lane 0, so every
    # cross-gate elementwise op is lane-aligned), EUP sigmoid/tanh, VPU combine.
    for t in range(S):
        r0, r1 = t * B, (t + 1) * B
        gh_r = jnp.dot(h, whh_r, preferred_element_type=jnp.float32)
        gh_z = jnp.dot(h, whh_z, preferred_element_type=jnp.float32)
        gh_n = jnp.dot(h, whh_n, preferred_element_type=jnp.float32) + bhn

        # PyTorch GRU gate order (r, z, n); b_hn stays inside r * (W_hn h + b_hn).
        r = jax.nn.sigmoid(gi_r_all[r0:r1, :] + gh_r)
        z = jax.nn.sigmoid(gi_z_all[r0:r1, :] + gh_z)
        n = jnp.tanh(gi_n_all[r0:r1, :] + r * gh_n)
        h_new = (1.0 - z) * n + z * h                            # (B, H)

        # packed-sequence masking: freeze h and zero-fill output for t >= len
        valid = lens > t                                         # (B, 1), t static
        h = jnp.where(valid, h_new, h)
        outs.append(jnp.where(valid, h_new, 0.0))

    # ---- single lane-dense store: (Bp, S*H) = (8, 256) slab -----------------
    out_ref[...] = jnp.concatenate(outs, axis=1).astype(out_ref.dtype)
    hid_ref[0] = h.astype(hid_ref.dtype)


# ----------------------------- wrapper --------------------------------------
@jax.jit
def encoder_forward(tokens, lengths, embed_table, w_ih, w_hh, b_ih, b_hh):
    """tokens: (B, S) int32, lengths: (B,) int32 (packed-seq style, <= S).
    Weights in PyTorch nn.GRU layout: w_ih (3H, D), w_hh (3H, H), b_* (3H,).
    Returns (output (S, B, H*num_dirs), hidden (num_layers*num_dirs, B, H))."""
    B, S = tokens.shape
    D = embed_table.shape[1]
    H = w_hh.shape[1]
    B_pad = max(8, ((B + 7) // 8) * 8)      # pad batch to sublane granularity

    # pad batch: padded rows get PAD tokens and length 0 (their h stays zero)
    tok_p = jnp.full((B_pad, S), PAD_IDX, tokens.dtype).at[:B].set(tokens)
    len_p = jnp.zeros((B_pad, 1), jnp.int32).at[:B, 0].set(lengths.astype(jnp.int32))

    # embedding gather (padding_idx row of the table is zero) + time-major flatten
    emb = embed_table[tok_p]                                      # (Bp, S, D)
    emb = jnp.transpose(emb, (1, 0, 2)).reshape(S * B_pad, D)     # (S*Bp, D)
    emb = emb.astype(jnp.float32)

    # split PyTorch fused weights/biases per gate (order r, z, n), transpose
    # for x @ W^T, and fold b_hr / b_hz into the input-projection biases.
    wih_r = w_ih[0:H].T.astype(jnp.float32)                       # (D, H)
    wih_z = w_ih[H:2 * H].T.astype(jnp.float32)
    wih_n = w_ih[2 * H:3 * H].T.astype(jnp.float32)
    whh_r = w_hh[0:H].T.astype(jnp.float32)                       # (H, H)
    whh_z = w_hh[H:2 * H].T.astype(jnp.float32)
    whh_n = w_hh[2 * H:3 * H].T.astype(jnp.float32)
    bi_r = (b_ih[0:H] + b_hh[0:H]).reshape(1, H).astype(jnp.float32)
    bi_z = (b_ih[H:2 * H] + b_hh[H:2 * H]).reshape(1, H).astype(jnp.float32)
    bi_n = b_ih[2 * H:3 * H].reshape(1, H).astype(jnp.float32)
    bhn = b_hh[2 * H:3 * H].reshape(1, H).astype(jnp.float32)

    vmem = pl.BlockSpec(memory_space=pltpu.MemorySpace.VMEM)
    out_slab, hidden = pl.pallas_call(
        encoder_gru_kernel,
        out_shape=(jax.ShapeDtypeStruct((B_pad, S * H), jnp.float32),
                   jax.ShapeDtypeStruct((NUM_LAYERS * NUM_DIRS, B_pad, H),
                                        jnp.float32)),
        in_specs=[vmem] * 12,
        out_specs=(vmem, vmem),
    )(emb, len_p,
      wih_r, wih_z, wih_n,
      whh_r, whh_z, whh_n,
      bi_r, bi_z, bi_n, bhn)

    # (Bp, S*H) slab -> (S, B, H)
    output = jnp.transpose(out_slab.reshape(B_pad, S, H), (1, 0, 2))[:, :B, :]
    return output, hidden[:, :B, :]


# ----------------------------- pure-JAX reference ----------------------------
def encoder_reference(tokens, lengths, embed_table, w_ih, w_hh, b_ih, b_hh):
    B, S = tokens.shape
    H = w_hh.shape[1]
    emb = embed_table[tokens]                       # (B, S, D)
    wih_t = w_ih.T                                  # (D, 3H)
    whh_t = w_hh.T                                  # (H, 3H)
    h = jnp.zeros((B, H), jnp.float32)
    outs = []
    for t in range(S):
        x_t = emb[:, t, :]
        gi = x_t @ wih_t + b_ih
        gh = h @ whh_t + b_hh
        r = jax.nn.sigmoid(gi[:, 0:H] + gh[:, 0:H])
        z = jax.nn.sigmoid(gi[:, H:2 * H] + gh[:, H:2 * H])
        n = jnp.tanh(gi[:, 2 * H:] + r * gh[:, 2 * H:])
        h_new = (1.0 - z) * n + z * h
        valid = (lengths > t)[:, None]
        h = jnp.where(valid, h_new, h)
        outs.append(jnp.where(valid, h_new, 0.0))
    return jnp.stack(outs, axis=0), h[None]


# ----------------------------- main ------------------------------------------
if __name__ == "__main__":
    key = jax.random.PRNGKey(0)
    k_emb, k_wih, k_whh, k_bih, k_bhh, k_tok = jax.random.split(key, 6)

    # deterministic synthetic parameters (PyTorch nn.Embedding / nn.GRU layout)
    embed_table = 0.1 * jax.random.normal(k_emb, (VOCAB, EMBED_DIM), jnp.float32)
    embed_table = embed_table.at[PAD_IDX].set(0.0)            # padding_idx row = 0
    w_ih = 0.1 * jax.random.normal(k_wih, (3 * HIDDEN, EMBED_DIM), jnp.float32)
    w_hh = 0.1 * jax.random.normal(k_whh, (3 * HIDDEN, HIDDEN), jnp.float32)
    b_ih = 0.1 * jax.random.normal(k_bih, (3 * HIDDEN,), jnp.float32)
    b_hh = 0.1 * jax.random.normal(k_bhh, (3 * HIDDEN,), jnp.float32)

    # inputs: (B, S) token ids, lengths sorted descending (pack_padded_sequence)
    lengths = jnp.array([8, 6, 5, 3], dtype=jnp.int32)
    tokens = jax.random.randint(k_tok, (BATCH, SEQ_LEN), 1, VOCAB, dtype=jnp.int32)
    time_idx = jnp.arange(SEQ_LEN)[None, :]
    tokens = jnp.where(time_idx < lengths[:, None], tokens, PAD_IDX)

    output, hidden = encoder_forward(tokens, lengths, embed_table,
                                     w_ih, w_hh, b_ih, b_hh)
    jax.block_until_ready((output, hidden))

    ref_out, ref_hid = encoder_reference(tokens, lengths, embed_table,
                                         w_ih, w_hh, b_ih, b_hh)

    assert output.shape == (SEQ_LEN, BATCH, HIDDEN * NUM_DIRS)
    assert hidden.shape == (NUM_LAYERS * NUM_DIRS, BATCH, HIDDEN)
    assert jnp.allclose(output, ref_out, atol=1e-5, rtol=1e-5)
    assert jnp.allclose(hidden, ref_hid, atol=1e-5, rtol=1e-5)
    print("KERNEL_OK")
</pallas_src>

<mosaic_0001>
module attributes {stable_mosaic.version = 11 : i64} {
  func.func @encoder_gru_kernel(%arg0: memref<64x32xf32, #tpu.memory_space<vmem>>, %arg1: memref<8x1xi32, #tpu.memory_space<vmem>>, %arg2: memref<32x32xf32, #tpu.memory_space<vmem>>, %arg3: memref<32x32xf32, #tpu.memory_space<vmem>>, %arg4: memref<32x32xf32, #tpu.memory_space<vmem>>, %arg5: memref<32x32xf32, #tpu.memory_space<vmem>>, %arg6: memref<32x32xf32, #tpu.memory_space<vmem>>, %arg7: memref<32x32xf32, #tpu.memory_space<vmem>>, %arg8: memref<1x32xf32, #tpu.memory_space<vmem>>, %arg9: memref<1x32xf32, #tpu.memory_space<vmem>>, %arg10: memref<1x32xf32, #tpu.memory_space<vmem>>, %arg11: memref<1x32xf32, #tpu.memory_space<vmem>>, %arg12: memref<8x256xf32, #tpu.memory_space<vmem>>, %arg13: memref<1x8x32xf32, #tpu.memory_space<vmem>>) attributes {dimension_semantics = [], scalar_prefetch = 0 : i64, scratch_operands = 0 : i64, tpu.core_type = #tpu.core_type<tc>} {
    %c0 = arith.constant 0 : index
    %c0_0 = arith.constant 0 : index
    %0 = vector.load %arg0[%c0, %c0_0] : memref<64x32xf32, #tpu.memory_space<vmem>>, vector<64x32xf32>
    %c0_1 = arith.constant 0 : index
    %c0_2 = arith.constant 0 : index
    %1 = vector.load %arg2[%c0_1, %c0_2] : memref<32x32xf32, #tpu.memory_space<vmem>>, vector<32x32xf32>
    %cst = arith.constant dense<0.000000e+00> : vector<64x32xf32>
    %2 = tpu.matmul %0, %1, %cst {dimension_numbers = #tpu.dot_dimension_numbers<[1], [0], [0], [1], [0, 0, 1, 1], [], []>} : vector<64x32xf32>, vector<32x32xf32>, vector<64x32xf32> -> vector<64x32xf32>
    %c0_3 = arith.constant 0 : index
    %c0_4 = arith.constant 0 : index
    %3 = vector.load %arg8[%c0_3, %c0_4] : memref<1x32xf32, #tpu.memory_space<vmem>>, vector<1x32xf32>
    %4 = vector.broadcast %3 : vector<1x32xf32> to vector<64x32xf32>
    %5 = arith.addf %2, %4 : vector<64x32xf32>
    %c0_5 = arith.constant 0 : index
    %c0_6 = arith.constant 0 : index
    %6 = vector.load %arg3[%c0_5, %c0_6] : memref<32x32xf32, #tpu.memory_space<vmem>>, vector<32x32xf32>
    %cst_7 = arith.constant dense<0.000000e+00> : vector<64x32xf32>
    %7 = tpu.matmul %0, %6, %cst_7 {dimension_numbers = #tpu.dot_dimension_numbers<[1], [0], [0], [1], [0, 0, 1, 1], [], []>} : vector<64x32xf32>, vector<32x32xf32>, vector<64x32xf32> -> vector<64x32xf32>
    %c0_8 = arith.constant 0 : index
    %c0_9 = arith.constant 0 : index
    %8 = vector.load %arg9[%c0_8, %c0_9] : memref<1x32xf32, #tpu.memory_space<vmem>>, vector<1x32xf32>
    %9 = vector.broadcast %8 : vector<1x32xf32> to vector<64x32xf32>
    %10 = arith.addf %7, %9 : vector<64x32xf32>
    %c0_10 = arith.constant 0 : index
    %c0_11 = arith.constant 0 : index
    %11 = vector.load %arg4[%c0_10, %c0_11] : memref<32x32xf32, #tpu.memory_space<vmem>>, vector<32x32xf32>
    %cst_12 = arith.constant dense<0.000000e+00> : vector<64x32xf32>
    %12 = tpu.matmul %0, %11, %cst_12 {dimension_numbers = #tpu.dot_dimension_numbers<[1], [0], [0], [1], [0, 0, 1, 1], [], []>} : vector<64x32xf32>, vector<32x32xf32>, vector<64x32xf32> -> vector<64x32xf32>
    %c0_13 = arith.constant 0 : index
    %c0_14 = arith.constant 0 : index
    %13 = vector.load %arg10[%c0_13, %c0_14] : memref<1x32xf32, #tpu.memory_space<vmem>>, vector<1x32xf32>
    %14 = vector.broadcast %13 : vector<1x32xf32> to vector<64x32xf32>
    %15 = arith.addf %12, %14 : vector<64x32xf32>
    %c0_15 = arith.constant 0 : index
    %c0_16 = arith.constant 0 : index
    %16 = vector.load %arg5[%c0_15, %c0_16] : memref<32x32xf32, #tpu.memory_space<vmem>>, vector<32x32xf32>
    %c0_17 = arith.constant 0 : index
    %c0_18 = arith.constant 0 : index
    %17 = vector.load %arg6[%c0_17, %c0_18] : memref<32x32xf32, #tpu.memory_space<vmem>>, vector<32x32xf32>
    %c0_19 = arith.constant 0 : index
    %c0_20 = arith.constant 0 : index
    %18 = vector.load %arg7[%c0_19, %c0_20] : memref<32x32xf32, #tpu.memory_space<vmem>>, vector<32x32xf32>
    %c0_21 = arith.constant 0 : index
    %c0_22 = arith.constant 0 : index
    %19 = vector.load %arg11[%c0_21, %c0_22] : memref<1x32xf32, #tpu.memory_space<vmem>>, vector<1x32xf32>
    %20 = vector.shape_cast %19 : vector<1x32xf32> to vector<1x32xf32>
    %21 = vector.broadcast %20 : vector<1x32xf32> to vector<8x32xf32>
    %c0_23 = arith.constant 0 : index
    %c0_24 = arith.constant 0 : index
    %22 = vector.load %arg1[%c0_23, %c0_24] : memref<8x1xi32, #tpu.memory_space<vmem>>, vector<8x1xi32>
    %cst_25 = arith.constant 0.000000e+00 : f32
    %23 = vector.broadcast %cst_25 : f32 to vector<8x32xf32>
    %cst_26 = arith.constant dense<0.000000e+00> : vector<8x32xf32>
    %24 = tpu.matmul %23, %16, %cst_26 {dimension_numbers = #tpu.dot_dimension_numbers<[1], [0], [0], [1], [0, 0, 1, 1], [], []>} : vector<8x32xf32>, vector<32x32xf32>, vector<8x32xf32> -> vector<8x32xf32>
    %cst_27 = arith.constant dense<0.000000e+00> : vector<8x32xf32>
    %25 = tpu.matmul %23, %17, %cst_27 {dimension_numbers = #tpu.dot_dimension_numbers<[1], [0], [0], [1], [0, 0, 1, 1], [], []>} : vector<8x32xf32>, vector<32x32xf32>, vector<8x32xf32> -> vector<8x32xf32>
    %cst_28 = arith.constant dense<0.000000e+00> : vector<8x32xf32>
    %26 = tpu.matmul %23, %18, %cst_28 {dimension_numbers = #tpu.dot_dimension_numbers<[1], [0], [0], [1], [0, 0, 1, 1], [], []>} : vector<8x32xf32>, vector<32x32xf32>, vector<8x32xf32> -> vector<8x32xf32>
    %27 = arith.addf %26, %21 : vector<8x32xf32>
    %28 = vector.extract_strided_slice %5 {offsets = [0, 0], sizes = [8, 32], strides = [1, 1]} : vector<64x32xf32> to vector<8x32xf32>
    %29 = arith.addf %28, %24 : vector<8x32xf32>
    %30 = arith.negf %29 : vector<8x32xf32>
    %31 = math.exp %30 : vector<8x32xf32>
    %cst_29 = arith.constant 1.000000e+00 : f32
    %32 = vector.broadcast %cst_29 : f32 to vector<8x32xf32>
    %33 = arith.addf %32, %31 : vector<8x32xf32>
    %34 = arith.divf %32, %33 : vector<8x32xf32>
    %35 = vector.extract_strided_slice %10 {offsets = [0, 0], sizes = [8, 32], strides = [1, 1]} : vector<64x32xf32> to vector<8x32xf32>
    %36 = arith.addf %35, %25 : vector<8x32xf32>
    %37 = arith.negf %36 : vector<8x32xf32>
    %38 = math.exp %37 : vector<8x32xf32>
    %cst_30 = arith.constant 1.000000e+00 : f32
    %39 = vector.broadcast %cst_30 : f32 to vector<8x32xf32>
    %40 = arith.addf %39, %38 : vector<8x32xf32>
    %41 = arith.divf %39, %40 : vector<8x32xf32>
    %42 = vector.extract_strided_slice %15 {offsets = [0, 0], sizes = [8, 32], strides = [1, 1]} : vector<64x32xf32> to vector<8x32xf32>
    %43 = arith.mulf %34, %27 : vector<8x32xf32>
    %44 = arith.addf %42, %43 : vector<8x32xf32>
    %45 = math.tanh %44 : vector<8x32xf32>
    %cst_31 = arith.constant 1.000000e+00 : f32
    %46 = vector.broadcast %cst_31 : f32 to vector<8x32xf32>
    %47 = arith.subf %46, %41 : vector<8x32xf32>
    %48 = arith.mulf %47, %45 : vector<8x32xf32>
    %49 = arith.mulf %41, %23 : vector<8x32xf32>
    %50 = arith.addf %48, %49 : vector<8x32xf32>
    %c0_i32 = arith.constant 0 : i32
    %51 = vector.broadcast %c0_i32 : i32 to vector<8x1xi32>
    %52 = arith.cmpi sgt, %22, %51 : vector<8x1xi32>
    %53 = vector.shape_cast %52 : vector<8x1xi1> to vector<8x1xi1>
    %54 = vector.broadcast %53 : vector<8x1xi1> to vector<8x32xi1>
    %55 = arith.select %54, %50, %23 : vector<8x32xi1>, vector<8x32xf32>
    %cst_32 = arith.constant 0.000000e+00 : f32
    %56 = vector.shape_cast %52 : vector<8x1xi1> to vector<8x1xi1>
    %57 = vector.broadcast %56 : vector<8x1xi1> to vector<8x32xi1>
    %58 = vector.broadcast %cst_32 : f32 to vector<8x32xf32>
    %59 = arith.select %57, %50, %58 : vector<8x32xi1>, vector<8x32xf32>
    %cst_33 = arith.constant dense<0.000000e+00> : vector<8x32xf32>
    %60 = tpu.matmul %55, %16, %cst_33 {dimension_numbers = #tpu.dot_dimension_numbers<[1], [0], [0], [1], [0, 0, 1, 1], [], []>} : vector<8x32xf32>, vector<32x32xf32>, vector<8x32xf32> -> vector<8x32xf32>
    %cst_34 = arith.constant dense<0.000000e+00> : vector<8x32xf32>
    %61 = tpu.matmul %55, %17, %cst_34 {dimension_numbers = #tpu.dot_dimension_numbers<[1], [0], [0], [1], [0, 0, 1, 1], [], []>} : vector<8x32xf32>, vector<32x32xf32>, vector<8x32xf32> -> vector<8x32xf32>
    %cst_35 = arith.constant dense<0.000000e+00> : vector<8x32xf32>
    %62 = tpu.matmul %55, %18, %cst_35 {dimension_numbers = #tpu.dot_dimension_numbers<[1], [0], [0], [1], [0, 0, 1, 1], [], []>} : vector<8x32xf32>, vector<32x32xf32>, vector<8x32xf32> -> vector<8x32xf32>
    %63 = arith.addf %62, %21 : vector<8x32xf32>
    %64 = vector.extract_strided_slice %5 {offsets = [8, 0], sizes = [8, 32], strides = [1, 1]} : vector<64x32xf32> to vector<8x32xf32>
    %65 = arith.addf %64, %60 : vector<8x32xf32>
    %66 = arith.negf %65 : vector<8x32xf32>
    %67 = math.exp %66 : vector<8x32xf32>
    %cst_36 = arith.constant 1.000000e+00 : f32
    %68 = vector.broadcast %cst_36 : f32 to vector<8x32xf32>
    %69 = arith.addf %68, %67 : vector<8x32xf32>
    %70 = arith.divf %68, %69 : vector<8x32xf32>
    %71 = vector.extract_strided_slice %10 {offsets = [8, 0], sizes = [8, 32], strides = [1, 1]} : vector<64x32xf32> to vector<8x32xf32>
    %72 = arith.addf %71, %61 : vector<8x32xf32>
    %73 = arith.negf %72 : vector<8x32xf32>
    %74 = math.exp %73 : vector<8x32xf32>
    %cst_37 = arith.constant 1.000000e+00 : f32
    %75 = vector.broadcast %cst_37 : f32 to vector<8x32xf32>
    %76 = arith.addf %75, %74 : vector<8x32xf32>
    %77 = arith.divf %75, %76 : vector<8x32xf32>
    %78 = vector.extract_strided_slice %15 {offsets = [8, 0], sizes = [8, 32], strides = [1, 1]} : vector<64x32xf32> to vector<8x32xf32>
    %79 = arith.mulf %70, %63 : vector<8x32xf32>
    %80 = arith.addf %78, %79 : vector<8x32xf32>
    %81 = math.tanh %80 : vector<8x32xf32>
    %cst_38 = arith.constant 1.000000e+00 : f32
    %82 = vector.broadcast %cst_38 : f32 to vector<8x32xf32>
    %83 = arith.subf %82, %77 : vector<8x32xf32>
    %84 = arith.mulf %83, %81 : vector<8x32xf32>
    %85 = arith.mulf %77, %55 : vector<8x32xf32>
    %86 = arith.addf %84, %85 : vector<8x32xf32>
    %c1_i32 = arith.constant 1 : i32
    %87 = vector.broadcast %c1_i32 : i32 to vector<8x1xi32>
    %88 = arith.cmpi sgt, %22, %87 : vector<8x1xi32>
    %89 = vector.shape_cast %88 : vector<8x1xi1> to vector<8x1xi1>
    %90 = vector.broadcast %89 : vector<8x1xi1> to vector<8x32xi1>
    %91 = arith.select %90, %86, %55 : vector<8x32xi1>, vector<8x32xf32>
    %cst_39 = arith.constant 0.000000e+00 : f32
    %92 = vector.shape_cast %88 : vector<8x1xi1> to vector<8x1xi1>
    %93 = vector.broadcast %92 : vector<8x1xi1> to vector<8x32xi1>
    %94 = vector.broadcast %cst_39 : f32 to vector<8x32xf32>
    %95 = arith.select %93, %86, %94 : vector<8x32xi1>, vector<8x32xf32>
    %cst_40 = arith.constant dense<0.000000e+00> : vector<8x32xf32>
    %96 = tpu.matmul %91, %16, %cst_40 {dimension_numbers = #tpu.dot_dimension_numbers<[1], [0], [0], [1], [0, 0, 1, 1], [], []>} : vector<8x32xf32>, vector<32x32xf32>, vector<8x32xf32> -> vector<8x32xf32>
    %cst_41 = arith.constant dense<0.000000e+00> : vector<8x32xf32>
    %97 = tpu.matmul %91, %17, %cst_41 {dimension_numbers = #tpu.dot_dimension_numbers<[1], [0], [0], [1], [0, 0, 1, 1], [], []>} : vector<8x32xf32>, vector<32x32xf32>, vector<8x32xf32> -> vector<8x32xf32>
    %cst_42 = arith.constant dense<0.000000e+00> : vector<8x32xf32>
    %98 = tpu.matmul %91, %18, %cst_42 {dimension_numbers = #tpu.dot_dimension_numbers<[1], [0], [0], [1], [0, 0, 1, 1], [], []>} : vector<8x32xf32>, vector<32x32xf32>, vector<8x32xf32> -> vector<8x32xf32>
    %99 = arith.addf %98, %21 : vector<8x32xf32>
    %100 = vector.extract_strided_slice %5 {offsets = [16, 0], sizes = [8, 32], strides = [1, 1]} : vector<64x32xf32> to vector<8x32xf32>
    %101 = arith.addf %100, %96 : vector<8x32xf32>
    %102 = arith.negf %101 : vector<8x32xf32>
    %103 = math.exp %102 : vector<8x32xf32>
    %cst_43 = arith.constant 1.000000e+00 : f32
    %104 = vector.broadcast %cst_43 : f32 to vector<8x32xf32>
    %105 = arith.addf %104, %103 : vector<8x32xf32>
    %106 = arith.divf %104, %105 : vector<8x32xf32>
    %107 = vector.extract_strided_slice %10 {offsets = [16, 0], sizes = [8, 32], strides = [1, 1]} : vector<64x32xf32> to vector<8x32xf32>
    %108 = arith.addf %107, %97 : vector<8x32xf32>
    %109 = arith.negf %108 : vector<8x32xf32>
    %110 = math.exp %109 : vector<8x32xf32>
    %cst_44 = arith.constant 1.000000e+00 : f32
    %111 = vector.broadcast %cst_44 : f32 to vector<8x32xf32>
    %112 = arith.addf %111, %110 : vector<8x32xf32>
    %113 = arith.divf %111, %112 : vector<8x32xf32>
    %114 = vector.extract_strided_slice %15 {offsets = [16, 0], sizes = [8, 32], strides = [1, 1]} : vector<64x32xf32> to vector<8x32xf32>
    %115 = arith.mulf %106, %99 : vector<8x32xf32>
    %116 = arith.addf %114, %115 : vector<8x32xf32>
    %117 = math.tanh %116 : vector<8x32xf32>
    %cst_45 = arith.constant 1.000000e+00 : f32
    %118 = vector.broadcast %cst_45 : f32 to vector<8x32xf32>
    %119 = arith.subf %118, %113 : vector<8x32xf32>
    %120 = arith.mulf %119, %117 : vector<8x32xf32>
    %121 = arith.mulf %113, %91 : vector<8x32xf32>
    %122 = arith.addf %120, %121 : vector<8x32xf32>
    %c2_i32 = arith.constant 2 : i32
    %123 = vector.broadcast %c2_i32 : i32 to vector<8x1xi32>
    %124 = arith.cmpi sgt, %22, %123 : vector<8x1xi32>
    %125 = vector.shape_cast %124 : vector<8x1xi1> to vector<8x1xi1>
    %126 = vector.broadcast %125 : vector<8x1xi1> to vector<8x32xi1>
    %127 = arith.select %126, %122, %91 : vector<8x32xi1>, vector<8x32xf32>
    %cst_46 = arith.constant 0.000000e+00 : f32
    %128 = vector.shape_cast %124 : vector<8x1xi1> to vector<8x1xi1>
    %129 = vector.broadcast %128 : vector<8x1xi1> to vector<8x32xi1>
    %130 = vector.broadcast %cst_46 : f32 to vector<8x32xf32>
    %131 = arith.select %129, %122, %130 : vector<8x32xi1>, vector<8x32xf32>
    %cst_47 = arith.constant dense<0.000000e+00> : vector<8x32xf32>
    %132 = tpu.matmul %127, %16, %cst_47 {dimension_numbers = #tpu.dot_dimension_numbers<[1], [0], [0], [1], [0, 0, 1, 1], [], []>} : vector<8x32xf32>, vector<32x32xf32>, vector<8x32xf32> -> vector<8x32xf32>
    %cst_48 = arith.constant dense<0.000000e+00> : vector<8x32xf32>
    %133 = tpu.matmul %127, %17, %cst_48 {dimension_numbers = #tpu.dot_dimension_numbers<[1], [0], [0], [1], [0, 0, 1, 1], [], []>} : vector<8x32xf32>, vector<32x32xf32>, vector<8x32xf32> -> vector<8x32xf32>
    %cst_49 = arith.constant dense<0.000000e+00> : vector<8x32xf32>
    %134 = tpu.matmul %127, %18, %cst_49 {dimension_numbers = #tpu.dot_dimension_numbers<[1], [0], [0], [1], [0, 0, 1, 1], [], []>} : vector<8x32xf32>, vector<32x32xf32>, vector<8x32xf32> -> vector<8x32xf32>
    %135 = arith.addf %134, %21 : vector<8x32xf32>
    %136 = vector.extract_strided_slice %5 {offsets = [24, 0], sizes = [8, 32], strides = [1, 1]} : vector<64x32xf32> to vector<8x32xf32>
    %137 = arith.addf %136, %132 : vector<8x32xf32>
    %138 = arith.negf %137 : vector<8x32xf32>
    %139 = math.exp %138 : vector<8x32xf32>
    %cst_50 = arith.constant 1.000000e+00 : f32
    %140 = vector.broadcast %cst_50 : f32 to vector<8x32xf32>
    %141 = arith.addf %140, %139 : vector<8x32xf32>
    %142 = arith.divf %140, %141 : vector<8x32xf32>
    %143 = vector.extract_strided_slice %10 {offsets = [24, 0], sizes = [8, 32], strides = [1, 1]} : vector<64x32xf32> to vector<8x32xf32>
    %144 = arith.addf %143, %133 : vector<8x32xf32>
    %145 = arith.negf %144 : vector<8x32xf32>
    %146 = math.exp %145 : vector<8x32xf32>
    %cst_51 = arith.constant 1.000000e+00 : f32
    %147 = vector.broadcast %cst_51 : f32 to vector<8x32xf32>
    %148 = arith.addf %147, %146 : vector<8x32xf32>
    %149 = arith.divf %147, %148 : vector<8x32xf32>
    %150 = vector.extract_strided_slice %15 {offsets = [24, 0], sizes = [8, 32], strides = [1, 1]} : vector<64x32xf32> to vector<8x32xf32>
    %151 = arith.mulf %142, %135 : vector<8x32xf32>
    %152 = arith.addf %150, %151 : vector<8x32xf32>
    %153 = math.tanh %152 : vector<8x32xf32>
    %cst_52 = arith.constant 1.000000e+00 : f32
    %154 = vector.broadcast %cst_52 : f32 to vector<8x32xf32>
    %155 = arith.subf %154, %149 : vector<8x32xf32>
    %156 = arith.mulf %155, %153 : vector<8x32xf32>
    %157 = arith.mulf %149, %127 : vector<8x32xf32>
    %158 = arith.addf %156, %157 : vector<8x32xf32>
    %c3_i32 = arith.constant 3 : i32
    %159 = vector.broadcast %c3_i32 : i32 to vector<8x1xi32>
    %160 = arith.cmpi sgt, %22, %159 : vector<8x1xi32>
    %161 = vector.shape_cast %160 : vector<8x1xi1> to vector<8x1xi1>
    %162 = vector.broadcast %161 : vector<8x1xi1> to vector<8x32xi1>
    %163 = arith.select %162, %158, %127 : vector<8x32xi1>, vector<8x32xf32>
    %cst_53 = arith.constant 0.000000e+00 : f32
    %164 = vector.shape_cast %160 : vector<8x1xi1> to vector<8x1xi1>
    %165 = vector.broadcast %164 : vector<8x1xi1> to vector<8x32xi1>
    %166 = vector.broadcast %cst_53 : f32 to vector<8x32xf32>
    %167 = arith.select %165, %158, %166 : vector<8x32xi1>, vector<8x32xf32>
    %cst_54 = arith.constant dense<0.000000e+00> : vector<8x32xf32>
    %168 = tpu.matmul %163, %16, %cst_54 {dimension_numbers = #tpu.dot_dimension_numbers<[1], [0], [0], [1], [0, 0, 1, 1], [], []>} : vector<8x32xf32>, vector<32x32xf32>, vector<8x32xf32> -> vector<8x32xf32>
    %cst_55 = arith.constant dense<0.000000e+00> : vector<8x32xf32>
    %169 = tpu.matmul %163, %17, %cst_55 {dimension_numbers = #tpu.dot_dimension_numbers<[1], [0], [0], [1], [0, 0, 1, 1], [], []>} : vector<8x32xf32>, vector<32x32xf32>, vector<8x32xf32> -> vector<8x32xf32>
    %cst_56 = arith.constant dense<0.000000e+00> : vector<8x32xf32>
    %170 = tpu.matmul %163, %18, %cst_56 {dimension_numbers = #tpu.dot_dimension_numbers<[1], [0], [0], [1], [0, 0, 1, 1], [], []>} : vector<8x32xf32>, vector<32x32xf32>, vector<8x32xf32> -> vector<8x32xf32>
    %171 = arith.addf %170, %21 : vector<8x32xf32>
    %172 = vector.extract_strided_slice %5 {offsets = [32, 0], sizes = [8, 32], strides = [1, 1]} : vector<64x32xf32> to vector<8x32xf32>
    %173 = arith.addf %172, %168 : vector<8x32xf32>
    %174 = arith.negf %173 : vector<8x32xf32>
    %175 = math.exp %174 : vector<8x32xf32>
    %cst_57 = arith.constant 1.000000e+00 : f32
    %176 = vector.broadcast %cst_57 : f32 to vector<8x32xf32>
    %177 = arith.addf %176, %175 : vector<8x32xf32>
    %178 = arith.divf %176, %177 : vector<8x32xf32>
    %179 = vector.extract_strided_slice %10 {offsets = [32, 0], sizes = [8, 32], strides = [1, 1]} : vector<64x32xf32> to vector<8x32xf32>
    %180 = arith.addf %179, %169 : vector<8x32xf32>
    %181 = arith.negf %180 : vector<8x32xf32>
    %182 = math.exp %181 : vector<8x32xf32>
    %cst_58 = arith.constant 1.000000e+00 : f32
    %183 = vector.broadcast %cst_58 : f32 to vector<8x32xf32>
    %184 = arith.addf %183, %182 : vector<8x32xf32>
    %185 = arith.divf %183, %184 : vector<8x32xf32>
    %186 = vector.extract_strided_slice %15 {offsets = [32, 0], sizes = [8, 32], strides = [1, 1]} : vector<64x32xf32> to vector<8x32xf32>
    %187 = arith.mulf %178, %171 : vector<8x32xf32>
    %188 = arith.addf %186, %187 : vector<8x32xf32>
    %189 = math.tanh %188 : vector<8x32xf32>
    %cst_59 = arith.constant 1.000000e+00 : f32
    %190 = vector.broadcast %cst_59 : f32 to vector<8x32xf32>
    %191 = arith.subf %190, %185 : vector<8x32xf32>
    %192 = arith.mulf %191, %189 : vector<8x32xf32>
    %193 = arith.mulf %185, %163 : vector<8x32xf32>
    %194 = arith.addf %192, %193 : vector<8x32xf32>
    %c4_i32 = arith.constant 4 : i32
    %195 = vector.broadcast %c4_i32 : i32 to vector<8x1xi32>
    %196 = arith.cmpi sgt, %22, %195 : vector<8x1xi32>
    %197 = vector.shape_cast %196 : vector<8x1xi1> to vector<8x1xi1>
    %198 = vector.broadcast %197 : vector<8x1xi1> to vector<8x32xi1>
    %199 = arith.select %198, %194, %163 : vector<8x32xi1>, vector<8x32xf32>
    %cst_60 = arith.constant 0.000000e+00 : f32
    %200 = vector.shape_cast %196 : vector<8x1xi1> to vector<8x1xi1>
    %201 = vector.broadcast %200 : vector<8x1xi1> to vector<8x32xi1>
    %202 = vector.broadcast %cst_60 : f32 to vector<8x32xf32>
    %203 = arith.select %201, %194, %202 : vector<8x32xi1>, vector<8x32xf32>
    %cst_61 = arith.constant dense<0.000000e+00> : vector<8x32xf32>
    %204 = tpu.matmul %199, %16, %cst_61 {dimension_numbers = #tpu.dot_dimension_numbers<[1], [0], [0], [1], [0, 0, 1, 1], [], []>} : vector<8x32xf32>, vector<32x32xf32>, vector<8x32xf32> -> vector<8x32xf32>
    %cst_62 = arith.constant dense<0.000000e+00> : vector<8x32xf32>
    %205 = tpu.matmul %199, %17, %cst_62 {dimension_numbers = #tpu.dot_dimension_numbers<[1], [0], [0], [1], [0, 0, 1, 1], [], []>} : vector<8x32xf32>, vector<32x32xf32>, vector<8x32xf32> -> vector<8x32xf32>
    %cst_63 = arith.constant dense<0.000000e+00> : vector<8x32xf32>
    %206 = tpu.matmul %199, %18, %cst_63 {dimension_numbers = #tpu.dot_dimension_numbers<[1], [0], [0], [1], [0, 0, 1, 1], [], []>} : vector<8x32xf32>, vector<32x32xf32>, vector<8x32xf32> -> vector<8x32xf32>
    %207 = arith.addf %206, %21 : vector<8x32xf32>
    %208 = vector.extract_strided_slice %5 {offsets = [40, 0], sizes = [8, 32], strides = [1, 1]} : vector<64x32xf32> to vector<8x32xf32>
    %209 = arith.addf %208, %204 : vector<8x32xf32>
    %210 = arith.negf %209 : vector<8x32xf32>
    %211 = math.exp %210 : vector<8x32xf32>
    %cst_64 = arith.constant 1.000000e+00 : f32
    %212 = vector.broadcast %cst_64 : f32 to vector<8x32xf32>
    %213 = arith.addf %212, %211 : vector<8x32xf32>
    %214 = arith.divf %212, %213 : vector<8x32xf32>
    %215 = vector.extract_strided_slice %10 {offsets = [40, 0], sizes = [8, 32], strides = [1, 1]} : vector<64x32xf32> to vector<8x32xf32>
    %216 = arith.addf %215, %205 : vector<8x32xf32>
    %217 = arith.negf %216 : vector<8x32xf32>
    %218 = math.exp %217 : vector<8x32xf32>
    %cst_65 = arith.constant 1.000000e+00 : f32
    %219 = vector.broadcast %cst_65 : f32 to vector<8x32xf32>
    %220 = arith.addf %219, %218 : vector<8x32xf32>
    %221 = arith.divf %219, %220 : vector<8x32xf32>
    %222 = vector.extract_strided_slice %15 {offsets = [40, 0], sizes = [8, 32], strides = [1, 1]} : vector<64x32xf32> to vector<8x32xf32>
    %223 = arith.mulf %214, %207 : vector<8x32xf32>
    %224 = arith.addf %222, %223 : vector<8x32xf32>
    %225 = math.tanh %224 : vector<8x32xf32>
    %cst_66 = arith.constant 1.000000e+00 : f32
    %226 = vector.broadcast %cst_66 : f32 to vector<8x32xf32>
    %227 = arith.subf %226, %221 : vector<8x32xf32>
    %228 = arith.mulf %227, %225 : vector<8x32xf32>
    %229 = arith.mulf %221, %199 : vector<8x32xf32>
    %230 = arith.addf %228, %229 : vector<8x32xf32>
    %c5_i32 = arith.constant 5 : i32
    %231 = vector.broadcast %c5_i32 : i32 to vector<8x1xi32>
    %232 = arith.cmpi sgt, %22, %231 : vector<8x1xi32>
    %233 = vector.shape_cast %232 : vector<8x1xi1> to vector<8x1xi1>
    %234 = vector.broadcast %233 : vector<8x1xi1> to vector<8x32xi1>
    %235 = arith.select %234, %230, %199 : vector<8x32xi1>, vector<8x32xf32>
    %cst_67 = arith.constant 0.000000e+00 : f32
    %236 = vector.shape_cast %232 : vector<8x1xi1> to vector<8x1xi1>
    %237 = vector.broadcast %236 : vector<8x1xi1> to vector<8x32xi1>
    %238 = vector.broadcast %cst_67 : f32 to vector<8x32xf32>
    %239 = arith.select %237, %230, %238 : vector<8x32xi1>, vector<8x32xf32>
    %cst_68 = arith.constant dense<0.000000e+00> : vector<8x32xf32>
    %240 = tpu.matmul %235, %16, %cst_68 {dimension_numbers = #tpu.dot_dimension_numbers<[1], [0], [0], [1], [0, 0, 1, 1], [], []>} : vector<8x32xf32>, vector<32x32xf32>, vector<8x32xf32> -> vector<8x32xf32>
    %cst_69 = arith.constant dense<0.000000e+00> : vector<8x32xf32>
    %241 = tpu.matmul %235, %17, %cst_69 {dimension_numbers = #tpu.dot_dimension_numbers<[1], [0], [0], [1], [0, 0, 1, 1], [], []>} : vector<8x32xf32>, vector<32x32xf32>, vector<8x32xf32> -> vector<8x32xf32>
    %cst_70 = arith.constant dense<0.000000e+00> : vector<8x32xf32>
    %242 = tpu.matmul %235, %18, %cst_70 {dimension_numbers = #tpu.dot_dimension_numbers<[1], [0], [0], [1], [0, 0, 1, 1], [], []>} : vector<8x32xf32>, vector<32x32xf32>, vector<8x32xf32> -> vector<8x32xf32>
    %243 = arith.addf %242, %21 : vector<8x32xf32>
    %244 = vector.extract_strided_slice %5 {offsets = [48, 0], sizes = [8, 32], strides = [1, 1]} : vector<64x32xf32> to vector<8x32xf32>
    %245 = arith.addf %244, %240 : vector<8x32xf32>
    %246 = arith.negf %245 : vector<8x32xf32>
    %247 = math.exp %246 : vector<8x32xf32>
    %cst_71 = arith.constant 1.000000e+00 : f32
    %248 = vector.broadcast %cst_71 : f32 to vector<8x32xf32>
    %249 = arith.addf %248, %247 : vector<8x32xf32>
    %250 = arith.divf %248, %249 : vector<8x32xf32>
    %251 = vector.extract_strided_slice %10 {offsets = [48, 0], sizes = [8, 32], strides = [1, 1]} : vector<64x32xf32> to vector<8x32xf32>
    %252 = arith.addf %251, %241 : vector<8x32xf32>
    %253 = arith.negf %252 : vector<8x32xf32>
    %254 = math.exp %253 : vector<8x32xf32>
    %cst_72 = arith.constant 1.000000e+00 : f32
    %255 = vector.broadcast %cst_72 : f32 to vector<8x32xf32>
    %256 = arith.addf %255, %254 : vector<8x32xf32>
    %257 = arith.divf %255, %256 : vector<8x32xf32>
    %258 = vector.extract_strided_slice %15 {offsets = [48, 0], sizes = [8, 32], strides = [1, 1]} : vector<64x32xf32> to vector<8x32xf32>
    %259 = arith.mulf %250, %243 : vector<8x32xf32>
    %260 = arith.addf %258, %259 : vector<8x32xf32>
    %261 = math.tanh %260 : vector<8x32xf32>
    %cst_73 = arith.constant 1.000000e+00 : f32
    %262 = vector.broadcast %cst_73 : f32 to vector<8x32xf32>
    %263 = arith.subf %262, %257 : vector<8x32xf32>
    %264 = arith.mulf %263, %261 : vector<8x32xf32>
    %265 = arith.mulf %257, %235 : vector<8x32xf32>
    %266 = arith.addf %264, %265 : vector<8x32xf32>
    %c6_i32 = arith.constant 6 : i32
    %267 = vector.broadcast %c6_i32 : i32 to vector<8x1xi32>
    %268 = arith.cmpi sgt, %22, %267 : vector<8x1xi32>
    %269 = vector.shape_cast %268 : vector<8x1xi1> to vector<8x1xi1>
    %270 = vector.broadcast %269 : vector<8x1xi1> to vector<8x32xi1>
    %271 = arith.select %270, %266, %235 : vector<8x32xi1>, vector<8x32xf32>
    %cst_74 = arith.constant 0.000000e+00 : f32
    %272 = vector.shape_cast %268 : vector<8x1xi1> to vector<8x1xi1>
    %273 = vector.broadcast %272 : vector<8x1xi1> to vector<8x32xi1>
    %274 = vector.broadcast %cst_74 : f32 to vector<8x32xf32>
    %275 = arith.select %273, %266, %274 : vector<8x32xi1>, vector<8x32xf32>
    %cst_75 = arith.constant dense<0.000000e+00> : vector<8x32xf32>
    %276 = tpu.matmul %271, %16, %cst_75 {dimension_numbers = #tpu.dot_dimension_numbers<[1], [0], [0], [1], [0, 0, 1, 1], [], []>} : vector<8x32xf32>, vector<32x32xf32>, vector<8x32xf32> -> vector<8x32xf32>
    %cst_76 = arith.constant dense<0.000000e+00> : vector<8x32xf32>
    %277 = tpu.matmul %271, %17, %cst_76 {dimension_numbers = #tpu.dot_dimension_numbers<[1], [0], [0], [1], [0, 0, 1, 1], [], []>} : vector<8x32xf32>, vector<32x32xf32>, vector<8x32xf32> -> vector<8x32xf32>
    %cst_77 = arith.constant dense<0.000000e+00> : vector<8x32xf32>
    %278 = tpu.matmul %271, %18, %cst_77 {dimension_numbers = #tpu.dot_dimension_numbers<[1], [0], [0], [1], [0, 0, 1, 1], [], []>} : vector<8x32xf32>, vector<32x32xf32>, vector<8x32xf32> -> vector<8x32xf32>
    %279 = arith.addf %278, %21 : vector<8x32xf32>
    %280 = vector.extract_strided_slice %5 {offsets = [56, 0], sizes = [8, 32], strides = [1, 1]} : vector<64x32xf32> to vector<8x32xf32>
    %281 = arith.addf %280, %276 : vector<8x32xf32>
    %282 = arith.negf %281 : vector<8x32xf32>
    %283 = math.exp %282 : vector<8x32xf32>
    %cst_78 = arith.constant 1.000000e+00 : f32
    %284 = vector.broadcast %cst_78 : f32 to vector<8x32xf32>
    %285 = arith.addf %284, %283 : vector<8x32xf32>
    %286 = arith.divf %284, %285 : vector<8x32xf32>
    %287 = vector.extract_strided_slice %10 {offsets = [56, 0], sizes = [8, 32], strides = [1, 1]} : vector<64x32xf32> to vector<8x32xf32>
    %288 = arith.addf %287, %277 : vector<8x32xf32>
    %289 = arith.negf %288 : vector<8x32xf32>
    %290 = math.exp %289 : vector<8x32xf32>
    %cst_79 = arith.constant 1.000000e+00 : f32
    %291 = vector.broadcast %cst_79 : f32 to vector<8x32xf32>
    %292 = arith.addf %291, %290 : vector<8x32xf32>
    %293 = arith.divf %291, %292 : vector<8x32xf32>
    %294 = vector.extract_strided_slice %15 {offsets = [56, 0], sizes = [8, 32], strides = [1, 1]} : vector<64x32xf32> to vector<8x32xf32>
    %295 = arith.mulf %286, %279 : vector<8x32xf32>
    %296 = arith.addf %294, %295 : vector<8x32xf32>
    %297 = math.tanh %296 : vector<8x32xf32>
    %cst_80 = arith.constant 1.000000e+00 : f32
    %298 = vector.broadcast %cst_80 : f32 to vector<8x32xf32>
    %299 = arith.subf %298, %293 : vector<8x32xf32>
    %300 = arith.mulf %299, %297 : vector<8x32xf32>
    %301 = arith.mulf %293, %271 : vector<8x32xf32>
    %302 = arith.addf %300, %301 : vector<8x32xf32>
    %c7_i32 = arith.constant 7 : i32
    %303 = vector.broadcast %c7_i32 : i32 to vector<8x1xi32>
    %304 = arith.cmpi sgt, %22, %303 : vector<8x1xi32>
    %305 = vector.shape_cast %304 : vector<8x1xi1> to vector<8x1xi1>
    %306 = vector.broadcast %305 : vector<8x1xi1> to vector<8x32xi1>
    %307 = arith.select %306, %302, %271 : vector<8x32xi1>, vector<8x32xf32>
    %cst_81 = arith.constant 0.000000e+00 : f32
    %308 = vector.shape_cast %304 : vector<8x1xi1> to vector<8x1xi1>
    %309 = vector.broadcast %308 : vector<8x1xi1> to vector<8x32xi1>
    %310 = vector.broadcast %cst_81 : f32 to vector<8x32xf32>
    %311 = arith.select %309, %302, %310 : vector<8x32xi1>, vector<8x32xf32>
    %312 = tpu.concatenate %59, %95, %131, %167, %203, %239, %275, %311 in 1 : vector<8x32xf32>, vector<8x32xf32>, vector<8x32xf32>, vector<8x32xf32>, vector<8x32xf32>, vector<8x32xf32>, vector<8x32xf32>, vector<8x32xf32> -> vector<8x256xf32>
    %c0_82 = arith.constant 0 : index
    %c0_83 = arith.constant 0 : index
    %313 = vector.load %arg12[%c0_82, %c0_83] : memref<8x256xf32, #tpu.memory_space<vmem>>, vector<8x256xf32>
    tpu.vector_store %arg12[%c0_82, %c0_83], %312 {strides = array<i32>} : memref<8x256xf32, #tpu.memory_space<vmem>>, vector<8x256xf32>,
    %c0_84 = arith.constant 0 : index
    %c0_85 = arith.constant 0 : index
    %c0_86 = arith.constant 0 : index
    %314 = vector.load %arg13[%c0_84, %c0_85, %c0_86] : memref<1x8x32xf32, #tpu.memory_space<vmem>>, vector<1x8x32xf32>
    %315 = vector.shape_cast %314 : vector<1x8x32xf32> to vector<8x32xf32>
    %316 = vector.shape_cast %307 : vector<8x32xf32> to vector<1x8x32xf32>
    tpu.vector_store %arg13[%c0_84, %c0_85, %c0_86], %316 {strides = array<i32>} : memref<1x8x32xf32, #tpu.memory_space<vmem>>, vector<1x8x32xf32>,
    return
  }
}

</mosaic_0001>

<llo_original>
// kernel: encoder_forward.1
$region0: #{encoder_forward.1}
  #allocation0 [shape = 'u32[]', space=smem, size = 0x4, offset = 0x4, fixed_abs, tag = 'smem constant byte address 0x4 - core index']
  #allocation1 [shape = 'u32[144,128]{1,0:T(1,128)}', space=vmem, size = 0x12000, scoped, tag = 'internal scratch']
  %s0 = inlined_call_operand.vmem [shape: f32[64,32], index: 0, kind: input, shape index: {}]
  %s1 = inlined_call_operand.vmem [shape: s32[8,1], index: 1, kind: input, shape index: {}]
  %s2 = inlined_call_operand.vmem [shape: f32[32,32], index: 2, kind: input, shape index: {}]
  %s3 = inlined_call_operand.vmem [shape: f32[32,32], index: 3, kind: input, shape index: {}]
  %s4 = inlined_call_operand.vmem [shape: f32[32,32], index: 4, kind: input, shape index: {}]
  %s5 = inlined_call_operand.vmem [shape: f32[32,32], index: 5, kind: input, shape index: {}]
  %s6 = inlined_call_operand.vmem [shape: f32[32,32], index: 6, kind: input, shape index: {}]
  %s7 = inlined_call_operand.vmem [shape: f32[32,32], index: 7, kind: input, shape index: {}]
  %s8 = inlined_call_operand.vmem [shape: f32[1,32], index: 8, kind: input, shape index: {}]
  %s9 = inlined_call_operand.vmem [shape: f32[1,32], index: 9, kind: input, shape index: {}]
  %s10 = inlined_call_operand.vmem [shape: f32[1,32], index: 10, kind: input, shape index: {}]
  %s11 = inlined_call_operand.vmem [shape: f32[1,32], index: 11, kind: input, shape index: {}]
  %s12 = inlined_call_operand.vmem [shape: f32[8,256], index: 12, kind: output, shape index: {0}]
  %s13 = inlined_call_operand.vmem [shape: f32[1,8,32], index: 13, kind: output, shape index: {1}]
  %14 = xla_tuple %s12, %s13
  %s15 = sld [smem:[#allocation0]]
  $region66: #{encoder_forward.1} parent=0
    _
  %s17 = ssub.s32 1, %s15
  %s18 = scalar_select 0, %s17, %s15
  // Predicated region
  $region2: #{encoder_forward.1} parent=0 // pred_check
    _
  $region3: #{encoder_forward.1} parent=0 // pred_check_branch
    %20 = sbr.rel (0) target = $region5
  $region4: #{encoder_forward.1} parent=0 // pred_region
    _
  $region5: #{encoder_forward.1} parent=0 // pred_fallthru
    _
  // Predicated region
  $region6: #{encoder_forward.1} parent=0 // pred_check
    _
  $region7: #{encoder_forward.1} parent=0 // pred_check_branch
    %22 = sbr.rel (0) target = $region9
  $region8: #{encoder_forward.1} parent=0 // pred_region
    _
  $region9: #{encoder_forward.1} parent=0 // pred_fallthru
    _
  // Predicated region
  $region10: #{encoder_forward.1} parent=0 // pred_check
    _
  $region11: #{encoder_forward.1} parent=0 // pred_check_branch
    %24 = sbr.rel (0) target = $region13
  $region12: #{encoder_forward.1} parent=0 // pred_region
    _
  $region13: #{encoder_forward.1} parent=0 // pred_fallthru
    _
  // Predicated region
  $region14: #{encoder_forward.1} parent=0 // pred_check
    _
  $region15: #{encoder_forward.1} parent=0 // pred_check_branch
    %26 = sbr.rel (0) target = $region17
  $region16: #{encoder_forward.1} parent=0 // pred_region
    _
  $region17: #{encoder_forward.1} parent=0 // pred_fallthru
    _
  // Predicated region
  $region18: #{encoder_forward.1} parent=0 // pred_check
    _
  $region19: #{encoder_forward.1} parent=0 // pred_check_branch
    %28 = sbr.rel (0) target = $region21
  $region20: #{encoder_forward.1} parent=0 // pred_region
    _
  $region21: #{encoder_forward.1} parent=0 // pred_fallthru
    _
  // Predicated region
  $region22: #{encoder_forward.1} parent=0 // pred_check
    _
  $region23: #{encoder_forward.1} parent=0 // pred_check_branch
    %30 = sbr.rel (0) target = $region25
  $region24: #{encoder_forward.1} parent=0 // pred_region
    _
  $region25: #{encoder_forward.1} parent=0 // pred_fallthru
    _
  // Predicated region
  $region26: #{encoder_forward.1} parent=0 // pred_check
    _
  $region27: #{encoder_forward.1} parent=0 // pred_check_branch
    %32 = sbr.rel (0) target = $region29
  $region28: #{encoder_forward.1} parent=0 // pred_region
    _
  $region29: #{encoder_forward.1} parent=0 // pred_fallthru
    _
  // Predicated region
  $region30: #{encoder_forward.1} parent=0 // pred_check
    _
  $region31: #{encoder_forward.1} parent=0 // pred_check_branch
    %34 = sbr.rel (0) target = $region33
  $region32: #{encoder_forward.1} parent=0 // pred_region
    _
  $region33: #{encoder_forward.1} parent=0 // pred_fallthru
    _
  // Predicated region
  $region34: #{encoder_forward.1} parent=0 // pred_check
    _
  $region35: #{encoder_forward.1} parent=0 // pred_check_branch
    %36 = sbr.rel (0) target = $region37
  $region36: #{encoder_forward.1} parent=0 // pred_region
    _
  $region37: #{encoder_forward.1} parent=0 // pred_fallthru
    _
  // Predicated region
  $region38: #{encoder_forward.1} parent=0 // pred_check
    _
  $region39: #{encoder_forward.1} parent=0 // pred_check_branch
    %38 = sbr.rel (0) target = $region41
  $region40: #{encoder_forward.1} parent=0 // pred_region
    _
  $region41: #{encoder_forward.1} parent=0 // pred_fallthru
    _
  // Predicated region
  $region42: #{encoder_forward.1} parent=0 // pred_check
    _
  $region43: #{encoder_forward.1} parent=0 // pred_check_branch
    %40 = sbr.rel (0) target = $region45
  $region44: #{encoder_forward.1} parent=0 // pred_region
    _
  $region45: #{encoder_forward.1} parent=0 // pred_fallthru
    _
  // Predicated region
  $region46: #{encoder_forward.1} parent=0 // pred_check
    _
  $region47: #{encoder_forward.1} parent=0 // pred_check_branch
    %42 = sbr.rel (0) target = $region49
  $region48: #{encoder_forward.1} parent=0 // pred_region
    _
  $region49: #{encoder_forward.1} parent=0 // pred_fallthru
    _
  %v43 = vld [vmem:[%s0] sm:$0xff]
  %v44 = vld [vmem:[%s0 + $0x8] sm:$0xff]
  %v45 = vld [vmem:[%s0 + $0x10] sm:$0xff]
  %v46 = vld [vmem:[%s0 + $0x18] sm:$0xff]
  %v47 = vld [vmem:[%s0 + $0x20] sm:$0xff]
  %v48 = vld [vmem:[%s0 + $0x28] sm:$0xff]
  %v49 = vld [vmem:[%s0 + $0x30] sm:$0xff]
  %v50 = vld [vmem:[%s0 + $0x38] sm:$0xff]
  %v51 = vld [vmem:[%s2] sm:$0xff]
  %v52 = vld [vmem:[%s2 + $0x8] sm:$0xff]
  %v53 = vld [vmem:[%s2 + $0x10] sm:$0xff]
  %v54 = vld [vmem:[%s2 + $0x18] sm:$0xff]
  %v55 = vld [vmem:[%s8] sm:$0x1]
  %v57 = vlaneseq
  %v58 = vshrl.u32 %v57, 7
  %v59 = vsub.s32 0, %v58
  %v60 = vrot.slane %v55, %v59
  %vm62 = vcmask 261120
  %v64 = vsel %vm62, %v43, 0
  %v67 = vsel %vm62, %v44, 0
  %v70 = vsel %vm62, %v45, 0
  %v73 = vsel %vm62, %v46, 0
  %v76 = vsel %vm62, %v47, 0
  %v79 = vsel %vm62, %v48, 0
  %v82 = vsel %vm62, %v49, 0
  %v85 = vsel %vm62, %v50, 0
  %87 = vmatprep.subr.mxu0 0.0
  %88 = vmatpush1.msra.mxu0 %v51
  %89 = vmatprep.subr.mxu0 0.0
  %90 = vmatpush1.msra.mxu0 %v52
  %91 = vmatprep.subr.mxu0 0.0
  %92 = vmatpush1.msra.mxu0 %v53
  %93 = vmatprep.subr.mxu0 0.0
  %94 = vmatpush1.msra.mxu0 %v54
  %95 = vmatprep.subr.mxu0 0.0
  %96 = vmatpush1.msra.mxu0 0.0
  %97 = vmatprep.subr.mxu0 0.0
  %98 = vmatpush1.msra.mxu0 0.0
  %99 = vmatprep.subr.mxu0 0.0
  %100 = vmatpush1.msra.mxu0 0.0
  %101 = vmatprep.subr.mxu0 0.0
  %102 = vmatpush1.msra.mxu0 0.0
  %103 = vmatprep.subr.mxu0 0.0
  %104 = vmatpush1.msra.mxu0 0.0
  %105 = vmatprep.subr.mxu0 0.0
  %106 = vmatpush1.msra.mxu0 0.0
  %107 = vmatprep.subr.mxu0 0.0
  %108 = vmatpush1.msra.mxu0 0.0
  %109 = vmatprep.subr.mxu0 0.0
  %110 = vmatpush1.msra.mxu0 0.0
  %111 = vmatprep.subr.mxu0 0.0
  %112 = vmatpush1.msra.mxu0 0.0
  %113 = vmatprep.subr.mxu0 0.0
  %114 = vmatpush1.msra.mxu0 0.0
  %115 = vmatprep.subr.mxu0 0.0
  %116 = vmatpush1.msra.mxu0 0.0
  %117 = vmatprep.subr.mxu0 0.0
  %118 = vmatpush1.msra.mxu0 0.0
  %119 = vmatprep.subr.mxu0 0.0
  %120 = vmatpush1.msra.mxu0 0.0
  %121 = vmatprep.subr.mxu0 0.0
  %122 = vmatpush1.msra.mxu0 0.0
  %123 = vmatprep.subr.mxu0 0.0
  %124 = vmatpush1.msra.mxu0 0.0
  %125 = vmatprep.subr.mxu0 0.0
  %126 = vmatpush1.msra.mxu0 0.0
  %127 = vmatprep.subr.mxu0 0.0
  %128 = vmatpush1.msra.mxu0 0.0
  %129 = vmatprep.subr.mxu0 0.0
  %130 = vmatpush1.msra.mxu0 0.0
  %131 = vmatprep.subr.mxu0 0.0
  %132 = vmatpush1.msra.mxu0 0.0
  %133 = vmatprep.subr.mxu0 0.0
  %134 = vmatpush1.msra.mxu0 0.0
  %135 = vmatprep.subr.mxu0 0.0
  %136 = vmatpush1.msra.mxu0 0.0
  %137 = vmatprep.subr.mxu0 0.0
  %138 = vmatpush1.msra.mxu0 0.0
  %139 = vmatprep.subr.mxu0 0.0
  %140 = vmatpush1.msra.mxu0 0.0
  %141 = vmatprep.subr.mxu0 0.0
  %142 = vmatpush1.msra.mxu0 0.0
  %143 = vmatprep.subr.mxu0 0.0
  %144 = vmatpush1.msra.mxu0 0.0
  %145 = vmatprep.subr.mxu0 0.0
  %146 = vmatpush1.msra.mxu0 0.0
  %147 = vmatprep.subr.mxu0 0.0
  %148 = vmatpush1.msra.mxu0 0.0
  %149 = vmatprep.subr.mxu0 0.0
  %150 = vmatpush1.msra.mxu0 0.0
  %151 = vmatprep.mubr.f32.mxu0 0.0
  %152 = vmatmul.mubr.f32.gmra.mrb[0].mxu0 %v64
  %v153 = vpop.f32.mrb[0].mxu0
  %v154 = vadd.f32 %v60, %v153
  %v155 = vpop.f32.mrb[0].mxu0
  %156 = vmatprep.mubr.f32.mxu0 0.0
  %157 = vmatmul.mubr.f32.gmra.mrb[0].mxu0 %v67
  %v158 = vpop.f32.mrb[0].mxu0
  %v159 = vadd.f32 %v60, %v158
  %v160 = vpop.f32.mrb[0].mxu0
  %161 = vmatprep.mubr.f32.mxu0 0.0
  %162 = vmatmul.mubr.f32.gmra.mrb[0].mxu0 %v70
  %v163 = vpop.f32.mrb[0].mxu0
  %v164 = vadd.f32 %v60, %v163
  %v165 = vpop.f32.mrb[0].mxu0
  %166 = vmatprep.mubr.f32.mxu0 0.0
  %167 = vmatmul.mubr.f32.gmra.mrb[0].mxu0 %v73
  %v168 = vpop.f32.mrb[0].mxu0
  %v169 = vadd.f32 %v60, %v168
  %v170 = vpop.f32.mrb[0].mxu0
  %171 = vmatprep.mubr.f32.mxu0 0.0
  %172 = vmatmul.mubr.f32.gmra.mrb[0].mxu0 %v76
  %v173 = vpop.f32.mrb[0].mxu0
  %v174 = vadd.f32 %v60, %v173
  %v175 = vpop.f32.mrb[0].mxu0
  %176 = vmatprep.mubr.f32.mxu0 0.0
  %177 = vmatmul.mubr.f32.gmra.mrb[0].mxu0 %v79
  %v178 = vpop.f32.mrb[0].mxu0
  %v179 = vadd.f32 %v60, %v178
  %v180 = vpop.f32.mrb[0].mxu0
  %181 = vmatprep.mubr.f32.mxu0 0.0
  %182 = vmatmul.mubr.f32.gmra.mrb[0].mxu0 %v82
  %v183 = vpop.f32.mrb[0].mxu0
  %v184 = vadd.f32 %v60, %v183
  %v185 = vpop.f32.mrb[0].mxu0
  %186 = vmatprep.mubr.f32.mxu0 0.0
  %187 = vmatmul.mubr.f32.gmra.mrb[0].mxu0 %v85
  %v188 = vpop.f32.mrb[0].mxu0
  %v189 = vadd.f32 %v60, %v188
  %v190 = vpop.f32.mrb[0].mxu0
  %191 = vdwg.mxu0
  %v192 = vld [vmem:[%s3] sm:$0xff]
  %v193 = vld [vmem:[%s3 + $0x8] sm:$0xff]
  %v194 = vld [vmem:[%s3 + $0x10] sm:$0xff]
  %v195 = vld [vmem:[%s3 + $0x18] sm:$0xff]
  %v196 = vld [vmem:[%s9] sm:$0x1]
  %v198 = vlaneseq
  %v199 = vshrl.u32 %v198, 7
  %v200 = vsub.s32 0, %v199
  %v201 = vrot.slane %v196, %v200
  %203 = vmatprep.subr.mxu0 0.0
  %204 = vmatpush1.msra.mxu0 %v192
  %205 = vmatprep.subr.mxu0 0.0
  %206 = vmatpush1.msra.mxu0 %v193
  %207 = vmatprep.subr.mxu0 0.0
  %208 = vmatpush1.msra.mxu0 %v194
  %209 = vmatprep.subr.mxu0 0.0
  %210 = vmatpush1.msra.mxu0 %v195
  %211 = vmatprep.subr.mxu0 0.0
  %212 = vmatpush1.msra.mxu0 0.0
  %213 = vmatprep.subr.mxu0 0.0
  %214 = vmatpush1.msra.mxu0 0.0
  %215 = vmatprep.subr.mxu0 0.0
  %216 = vmatpush1.msra.mxu0 0.0
  %217 = vmatprep.subr.mxu0 0.0
  %218 = vmatpush1.msra.mxu0 0.0
  %219 = vmatprep.subr.mxu0 0.0
  %220 = vmatpush1.msra.mxu0 0.0
  %221 = vmatprep.subr.mxu0 0.0
  %222 = vmatpush1.msra.mxu0 0.0
  %223 = vmatprep.subr.mxu0 0.0
  %224 = vmatpush1.msra.mxu0 0.0
  %225 = vmatprep.subr.mxu0 0.0
  %226 = vmatpush1.msra.mxu0 0.0
  %227 = vmatprep.subr.mxu0 0.0
  %228 = vmatpush1.msra.mxu0 0.0
  %229 = vmatprep.subr.mxu0 0.0
  %230 = vmatpush1.msra.mxu0 0.0
  %231 = vmatprep.subr.mxu0 0.0
  %232 = vmatpush1.msra.mxu0 0.0
  %233 = vmatprep.subr.mxu0 0.0
  %234 = vmatpush1.msra.mxu0 0.0
  %235 = vmatprep.subr.mxu0 0.0
  %236 = vmatpush1.msra.mxu0 0.0
  %237 = vmatprep.subr.mxu0 0.0
  %238 = vmatpush1.msra.mxu0 0.0
  %239 = vmatprep.subr.mxu0 0.0
  %240 = vmatpush1.msra.mxu0 0.0
  %241 = vmatprep.subr.mxu0 0.0
  %242 = vmatpush1.msra.mxu0 0.0
  %243 = vmatprep.subr.mxu0 0.0
  %244 = vmatpush1.msra.mxu0 0.0
  %245 = vmatprep.subr.mxu0 0.0
  %246 = vmatpush1.msra.mxu0 0.0
  %247 = vmatprep.subr.mxu0 0.0
  %248 = vmatpush1.msra.mxu0 0.0
  %249 = vmatprep.subr.mxu0 0.0
  %250 = vmatpush1.msra.mxu0 0.0
  %251 = vmatprep.subr.mxu0 0.0
  %252 = vmatpush1.msra.mxu0 0.0
  %253 = vmatprep.subr.mxu0 0.0
  %254 = vmatpush1.msra.mxu0 0.0
  %255 = vmatprep.subr.mxu0 0.0
  %256 = vmatpush1.msra.mxu0 0.0
  %257 = vmatprep.subr.mxu0 0.0
  %258 = vmatpush1.msra.mxu0 0.0
  %259 = vmatprep.subr.mxu0 0.0
  %260 = vmatpush1.msra.mxu0 0.0
  %261 = vmatprep.subr.mxu0 0.0
  %262 = vmatpush1.msra.mxu0 0.0
  %263 = vmatprep.subr.mxu0 0.0
  %264 = vmatpush1.msra.mxu0 0.0
  %265 = vmatprep.subr.mxu0 0.0
  %266 = vmatpush1.msra.mxu0 0.0
  %267 = vmatprep.mubr.f32.mxu0 0.0
  %268 = vmatmul.mubr.f32.gmra.mrb[0].mxu0 %v64
  %v269 = vpop.f32.mrb[0].mxu0
  %v270 = vadd.f32 %v201, %v269
  %v271 = vpop.f32.mrb[0].mxu0
  %272 = vmatprep.mubr.f32.mxu0 0.0
  %273 = vmatmul.mubr.f32.gmra.mrb[0].mxu0 %v67
  %v274 = vpop.f32.mrb[0].mxu0
  %v275 = vadd.f32 %v201, %v274
  %v276 = vpop.f32.mrb[0].mxu0
  %277 = vmatprep.mubr.f32.mxu0 0.0
  %278 = vmatmul.mubr.f32.gmra.mrb[0].mxu0 %v70
  %v279 = vpop.f32.mrb[0].mxu0
  %v280 = vadd.f32 %v201, %v279
  %v281 = vpop.f32.mrb[0].mxu0
  %282 = vmatprep.mubr.f32.mxu0 0.0
  %283 = vmatmul.mubr.f32.gmra.mrb[0].mxu0 %v73
  %v284 = vpop.f32.mrb[0].mxu0
  %v285 = vadd.f32 %v201, %v284
  %v286 = vpop.f32.mrb[0].mxu0
  %287 = vmatprep.mubr.f32.mxu0 0.0
  %288 = vmatmul.mubr.f32.gmra.mrb[0].mxu0 %v76
  %v289 = vpop.f32.mrb[0].mxu0
  %v290 = vadd.f32 %v201, %v289
  %v291 = vpop.f32.mrb[0].mxu0
  %292 = vmatprep.mubr.f32.mxu0 0.0
  %293 = vmatmul.mubr.f32.gmra.mrb[0].mxu0 %v79
  %v294 = vpop.f32.mrb[0].mxu0
  %v295 = vadd.f32 %v201, %v294
  %v296 = vpop.f32.mrb[0].mxu0
  %297 = vmatprep.mubr.f32.mxu0 0.0
  %298 = vmatmul.mubr.f32.gmra.mrb[0].mxu0 %v82
  %v299 = vpop.f32.mrb[0].mxu0
  %v300 = vadd.f32 %v201, %v299
  %v301 = vpop.f32.mrb[0].mxu0
  %302 = vmatprep.mubr.f32.mxu0 0.0
  %303 = vmatmul.mubr.f32.gmra.mrb[0].mxu0 %v85
  %v304 = vpop.f32.mrb[0].mxu0
  %v305 = vadd.f32 %v201, %v304
  %v306 = vpop.f32.mrb[0].mxu0
  %307 = vdwg.mxu0
  %v308 = vld [vmem:[%s4] sm:$0xff]
  %v309 = vld [vmem:[%s4 + $0x8] sm:$0xff]
  %v310 = vld [vmem:[%s4 + $0x10] sm:$0xff]
  %v311 = vld [vmem:[%s4 + $0x18] sm:$0xff]
  %v312 = vld [vmem:[%s10] sm:$0x1]
  %v314 = vlaneseq
  %v315 = vshrl.u32 %v314, 7
  %v316 = vsub.s32 0, %v315
  %v317 = vrot.slane %v312, %v316
  %319 = vmatprep.subr.mxu0 0.0
  %320 = vmatpush1.msra.mxu0 %v308
  %321 = vmatprep.subr.mxu0 0.0
  %322 = vmatpush1.msra.mxu0 %v309
  %323 = vmatprep.subr.mxu0 0.0
  %324 = vmatpush1.msra.mxu0 %v310
  %325 = vmatprep.subr.mxu0 0.0
  %326 = vmatpush1.msra.mxu0 %v311
  %327 = vmatprep.subr.mxu0 0.0
  %328 = vmatpush1.msra.mxu0 0.0
  %329 = vmatprep.subr.mxu0 0.0
  %330 = vmatpush1.msra.mxu0 0.0
  %331 = vmatprep.subr.mxu0 0.0
  %332 = vmatpush1.msra.mxu0 0.0
  %333 = vmatprep.subr.mxu0 0.0
  %334 = vmatpush1.msra.mxu0 0.0
  %335 = vmatprep.subr.mxu0 0.0
  %336 = vmatpush1.msra.mxu0 0.0
  %337 = vmatprep.subr.mxu0 0.0
  %338 = vmatpush1.msra.mxu0 0.0
  %339 = vmatprep.subr.mxu0 0.0
  %340 = vmatpush1.msra.mxu0 0.0
  %341 = vmatprep.subr.mxu0 0.0
  %342 = vmatpush1.msra.mxu0 0.0
  %343 = vmatprep.subr.mxu0 0.0
  %344 = vmatpush1.msra.mxu0 0.0
  %345 = vmatprep.subr.mxu0 0.0
  %346 = vmatpush1.msra.mxu0 0.0
  %347 = vmatprep.subr.mxu0 0.0
  %348 = vmatpush1.msra.mxu0 0.0
  %349 = vmatprep.subr.mxu0 0.0
  %350 = vmatpush1.msra.mxu0 0.0
  %351 = vmatprep.subr.mxu0 0.0
  %352 = vmatpush1.msra.mxu0 0.0
  %353 = vmatprep.subr.mxu0 0.0
  %354 = vmatpush1.msra.mxu0 0.0
  %355 = vmatprep.subr.mxu0 0.0
  %356 = vmatpush1.msra.mxu0 0.0
  %357 = vmatprep.subr.mxu0 0.0
  %358 = vmatpush1.msra.mxu0 0.0
  %359 = vmatprep.subr.mxu0 0.0
  %360 = vmatpush1.msra.mxu0 0.0
  %361 = vmatprep.subr.mxu0 0.0
  %362 = vmatpush1.msra.mxu0 0.0
  %363 = vmatprep.subr.mxu0 0.0
  %364 = vmatpush1.msra.mxu0 0.0
  %365 = vmatprep.subr.mxu0 0.0
  %366 = vmatpush1.msra.mxu0 0.0
  %367 = vmatprep.subr.mxu0 0.0
  %368 = vmatpush1.msra.mxu0 0.0
  %369 = vmatprep.subr.mxu0 0.0
  %370 = vmatpush1.msra.mxu0 0.0
  %371 = vmatprep.subr.mxu0 0.0
  %372 = vmatpush1.msra.mxu0 0.0
  %373 = vmatprep.subr.mxu0 0.0
  %374 = vmatpush1.msra.mxu0 0.0
  %375 = vmatprep.subr.mxu0 0.0
  %376 = vmatpush1.msra.mxu0 0.0
  %377 = vmatprep.subr.mxu0 0.0
  %378 = vmatpush1.msra.mxu0 0.0
  %379 = vmatprep.subr.mxu0 0.0
  %380 = vmatpush1.msra.mxu0 0.0
  %381 = vmatprep.subr.mxu0 0.0
  %382 = vmatpush1.msra.mxu0 0.0
  %383 = vmatprep.mubr.f32.mxu0 0.0
  %384 = vmatmul.mubr.f32.gmra.mrb[0].mxu0 %v64
  %v385 = vpop.f32.mrb[0].mxu0
  %v386 = vadd.f32 %v317, %v385
  %v387 = vpop.f32.mrb[0].mxu0
  %388 = vmatprep.mubr.f32.mxu0 0.0
  %389 = vmatmul.mubr.f32.gmra.mrb[0].mxu0 %v67
  %v390 = vpop.f32.mrb[0].mxu0
  %v391 = vadd.f32 %v317, %v390
  %v392 = vpop.f32.mrb[0].mxu0
  %393 = vmatprep.mubr.f32.mxu0 0.0
  %394 = vmatmul.mubr.f32.gmra.mrb[0].mxu0 %v70
  %v395 = vpop.f32.mrb[0].mxu0
  %v396 = vadd.f32 %v317, %v395
  %v397 = vpop.f32.mrb[0].mxu0
  %398 = vmatprep.mubr.f32.mxu0 0.0
  %399 = vmatmul.mubr.f32.gmra.mrb[0].mxu0 %v73
  %v400 = vpop.f32.mrb[0].mxu0
  %v401 = vadd.f32 %v317, %v400
  %v402 = vpop.f32.mrb[0].mxu0
  %403 = vmatprep.mubr.f32.mxu0 0.0
  %404 = vmatmul.mubr.f32.gmra.mrb[0].mxu0 %v76
  %v405 = vpop.f32.mrb[0].mxu0
  %v406 = vadd.f32 %v317, %v405
  %v407 = vpop.f32.mrb[0].mxu0
  %408 = vmatprep.mubr.f32.mxu0 0.0
  %409 = vmatmul.mubr.f32.gmra.mrb[0].mxu0 %v79
  %v410 = vpop.f32.mrb[0].mxu0
  %v411 = vadd.f32 %v317, %v410
  %v412 = vpop.f32.mrb[0].mxu0
  %413 = vmatprep.mubr.f32.mxu0 0.0
  %414 = vmatmul.mubr.f32.gmra.mrb[0].mxu0 %v82
  %v415 = vpop.f32.mrb[0].mxu0
  %v416 = vadd.f32 %v317, %v415
  %v417 = vpop.f32.mrb[0].mxu0
  %418 = vmatprep.mubr.f32.mxu0 0.0
  %419 = vmatmul.mubr.f32.gmra.mrb[0].mxu0 %v85
  %v420 = vpop.f32.mrb[0].mxu0
  %v421 = vadd.f32 %v317, %v420
  %v422 = vpop.f32.mrb[0].mxu0
  %423 = vdwg.mxu0
  %v424 = vld [vmem:[%s5] sm:$0xff]
  %v425 = vld [vmem:[%s5 + $0x8] sm:$0xff]
  %v426 = vld [vmem:[%s5 + $0x10] sm:$0xff]
  %v427 = vld [vmem:[%s5 + $0x18] sm:$0xff]
  %v428 = vld [vmem:[%s6] sm:$0xff]
  %v429 = vld [vmem:[%s6 + $0x8] sm:$0xff]
  %v430 = vld [vmem:[%s6 + $0x10] sm:$0xff]
  %v431 = vld [vmem:[%s6 + $0x18] sm:$0xff]
  %v432 = vld [vmem:[%s7] sm:$0xff]
  %v433 = vld [vmem:[%s7 + $0x8] sm:$0xff]
  %v434 = vld [vmem:[%s7 + $0x10] sm:$0xff]
  %v435 = vld [vmem:[%s7 + $0x18] sm:$0xff]
  %v436 = vld [vmem:[%s11] sm:$0x1]
  %v438 = vlaneseq
  %v439 = vshrl.u32 %v438, 7
  %v440 = vsub.s32 0, %v439
  %v441 = vrot.slane %v436, %v440
  %v443 = vld [vmem:[%s1] sm:$0xff]
  %v445 = vsel %vm62, 0.0, 0
  %447 = vmatprep.subr.mxu0 0.0
  %448 = vmatpush1.msra.mxu0 %v424
  %449 = vmatprep.subr.mxu0 0.0
  %450 = vmatpush1.msra.mxu0 %v425
  %451 = vmatprep.subr.mxu0 0.0
  %452 = vmatpush1.msra.mxu0 %v426
  %453 = vmatprep.subr.mxu0 0.0
  %454 = vmatpush1.msra.mxu0 %v427
  %455 = vmatprep.subr.mxu0 0.0
  %456 = vmatpush1.msra.mxu0 0.0
  %457 = vmatprep.subr.mxu0 0.0
  %458 = vmatpush1.msra.mxu0 0.0
  %459 = vmatprep.subr.mxu0 0.0
  %460 = vmatpush1.msra.mxu0 0.0
  %461 = vmatprep.subr.mxu0 0.0
  %462 = vmatpush1.msra.mxu0 0.0
  %463 = vmatprep.subr.mxu0 0.0
  %464 = vmatpush1.msra.mxu0 0.0
  %465 = vmatprep.subr.mxu0 0.0
  %466 = vmatpush1.msra.mxu0 0.0
  %467 = vmatprep.subr.mxu0 0.0
  %468 = vmatpush1.msra.mxu0 0.0
  %469 = vmatprep.subr.mxu0 0.0
  %470 = vmatpush1.msra.mxu0 0.0
  %471 = vmatprep.subr.mxu0 0.0
  %472 = vmatpush1.msra.mxu0 0.0
  %473 = vmatprep.subr.mxu0 0.0
  %474 = vmatpush1.msra.mxu0 0.0
  %475 = vmatprep.subr.mxu0 0.0
  %476 = vmatpush1.msra.mxu0 0.0
  %477 = vmatprep.subr.mxu0 0.0
  %478 = vmatpush1.msra.mxu0 0.0
  %479 = vmatprep.subr.mxu0 0.0
  %480 = vmatpush1.msra.mxu0 0.0
  %481 = vmatprep.subr.mxu0 0.0
  %482 = vmatpush1.msra.mxu0 0.0
  %483 = vmatprep.subr.mxu0 0.0
  %484 = vmatpush1.msra.mxu0 0.0
  %485 = vmatprep.subr.mxu0 0.0
  %486 = vmatpush1.msra.mxu0 0.0
  %487 = vmatprep.subr.mxu0 0.0
  %488 = vmatpush1.msra.mxu0 0.0
  %489 = vmatprep.subr.mxu0 0.0
  %490 = vmatpush1.msra.mxu0 0.0
  %491 = vmatprep.subr.mxu0 0.0
  %492 = vmatpush1.msra.mxu0 0.0
  %493 = vmatprep.subr.mxu0 0.0
  %494 = vmatpush1.msra.mxu0 0.0
  %495 = vmatprep.subr.mxu0 0.0
  %496 = vmatpush1.msra.mxu0 0.0
  %497 = vmatprep.subr.mxu0 0.0
  %498 = vmatpush1.msra.mxu0 0.0
  %499 = vmatprep.subr.mxu0 0.0
  %500 = vmatpush1.msra.mxu0 0.0
  %501 = vmatprep.subr.mxu0 0.0
  %502 = vmatpush1.msra.mxu0 0.0
  %503 = vmatprep.subr.mxu0 0.0
  %504 = vmatpush1.msra.mxu0 0.0
  %505 = vmatprep.subr.mxu0 0.0
  %506 = vmatpush1.msra.mxu0 0.0
  %507 = vmatprep.subr.mxu0 0.0
  %508 = vmatpush1.msra.mxu0 0.0
  %509 = vmatprep.subr.mxu0 0.0
  %510 = vmatpush1.msra.mxu0 0.0
  %511 = vmatprep.mubr.f32.mxu0 0.0
  %512 = vmatmul.mubr.f32.gmra.mrb[0].mxu0 %v445
  %v513 = vpop.f32.mrb[0].mxu0
  %v514 = vadd.f32 0.0, %v513
  %v515 = vpop.f32.mrb[0].mxu0
  %516 = vdwg.mxu0
  %517 = vmatprep.subr.mxu0 0.0
  %518 = vmatpush1.msra.mxu0 %v428
  %519 = vmatprep.subr.mxu0 0.0
  %520 = vmatpush1.msra.mxu0 %v429
  %521 = vmatprep.subr.mxu0 0.0
  %522 = vmatpush1.msra.mxu0 %v430
  %523 = vmatprep.subr.mxu0 0.0
  %524 = vmatpush1.msra.mxu0 %v431
  %525 = vmatprep.subr.mxu0 0.0
  %526 = vmatpush1.msra.mxu0 0.0
  %527 = vmatprep.subr.mxu0 0.0
  %528 = vmatpush1.msra.mxu0 0.0
  %529 = vmatprep.subr.mxu0 0.0
  %530 = vmatpush1.msra.mxu0 0.0
  %531 = vmatprep.subr.mxu0 0.0
  %532 = vmatpush1.msra.mxu0 0.0
  %533 = vmatprep.subr.mxu0 0.0
  %534 = vmatpush1.msra.mxu0 0.0
  %535 = vmatprep.subr.mxu0 0.0
  %536 = vmatpush1.msra.mxu0 0.0
  %537 = vmatprep.subr.mxu0 0.0
  %538 = vmatpush1.msra.mxu0 0.0
  %539 = vmatprep.subr.mxu0 0.0
  %540 = vmatpush1.msra.mxu0 0.0
  %541 = vmatprep.subr.mxu0 0.0
  %542 = vmatpush1.msra.mxu0 0.0
  %543 = vmatprep.subr.mxu0 0.0
  %544 = vmatpush1.msra.mxu0 0.0
  %545 = vmatprep.subr.mxu0 0.0
  %546 = vmatpush1.msra.mxu0 0.0
  %547 = vmatprep.subr.mxu0 0.0
  %548 = vmatpush1.msra.mxu0 0.0
  %549 = vmatprep.subr.mxu0 0.0
  %550 = vmatpush1.msra.mxu0 0.0
  %551 = vmatprep.subr.mxu0 0.0
  %552 = vmatpush1.msra.mxu0 0.0
  %553 = vmatprep.subr.mxu0 0.0
  %554 = vmatpush1.msra.mxu0 0.0
  %555 = vmatprep.subr.mxu0 0.0
  %556 = vmatpush1.msra.mxu0 0.0
  %557 = vmatprep.subr.mxu0 0.0
  %558 = vmatpush1.msra.mxu0 0.0
  %559 = vmatprep.subr.mxu0 0.0
  %560 = vmatpush1.msra.mxu0 0.0
  %561 = vmatprep.subr.mxu0 0.0
  %562 = vmatpush1.msra.mxu0 0.0
  %563 = vmatprep.subr.mxu0 0.0
  %564 = vmatpush1.msra.mxu0 0.0
  %565 = vmatprep.subr.mxu0 0.0
  %566 = vmatpush1.msra.mxu0 0.0
  %567 = vmatprep.subr.mxu0 0.0
  %568 = vmatpush1.msra.mxu0 0.0
  %569 = vmatprep.subr.mxu0 0.0
  %570 = vmatpush1.msra.mxu0 0.0
  %571 = vmatprep.subr.mxu0 0.0
  %572 = vmatpush1.msra.mxu0 0.0
  %573 = vmatprep.subr.mxu0 0.0
  %574 = vmatpush1.msra.mxu0 0.0
  %575 = vmatprep.subr.mxu0 0.0
  %576 = vmatpush1.msra.mxu0 0.0
  %577 = vmatprep.subr.mxu0 0.0
  %578 = vmatpush1.msra.mxu0 0.0
  %579 = vmatprep.subr.mxu0 0.0
  %580 = vmatpush1.msra.mxu0 0.0
  %581 = vmatprep.mubr.f32.mxu0 0.0
  %582 = vmatmul.mubr.f32.gmra.mrb[0].mxu0 %v445
  %v583 = vpop.f32.mrb[0].mxu0
  %v584 = vadd.f32 0.0, %v583
  %v585 = vpop.f32.mrb[0].mxu0
  %586 = vdwg.mxu0
  %587 = vmatprep.subr.mxu0 0.0
  %588 = vmatpush1.msra.mxu0 %v432
  %589 = vmatprep.subr.mxu0 0.0
  %590 = vmatpush1.msra.mxu0 %v433
  %591 = vmatprep.subr.mxu0 0.0
  %592 = vmatpush1.msra.mxu0 %v434
  %593 = vmatprep.subr.mxu0 0.0
  %594 = vmatpush1.msra.mxu0 %v435
  %595 = vmatprep.subr.mxu0 0.0
  %596 = vmatpush1.msra.mxu0 0.0
  %597 = vmatprep.subr.mxu0 0.0
  %598 = vmatpush1.msra.mxu0 0.0
  %599 = vmatprep.subr.mxu0 0.0
  %600 = vmatpush1.msra.mxu0 0.0
  %601 = vmatprep.subr.mxu0 0.0
  %602 = vmatpush1.msra.mxu0 0.0
  %603 = vmatprep.subr.mxu0 0.0
  %604 = vmatpush1.msra.mxu0 0.0
  %605 = vmatprep.subr.mxu0 0.0
  %606 = vmatpush1.msra.mxu0 0.0
  %607 = vmatprep.subr.mxu0 0.0
  %608 = vmatpush1.msra.mxu0 0.0
  %609 = vmatprep.subr.mxu0 0.0
  %610 = vmatpush1.msra.mxu0 0.0
  %611 = vmatprep.subr.mxu0 0.0
  %612 = vmatpush1.msra.mxu0 0.0
  %613 = vmatprep.subr.mxu0 0.0
  %614 = vmatpush1.msra.mxu0 0.0
  %615 = vmatprep.subr.mxu0 0.0
  %616 = vmatpush1.msra.mxu0 0.0
  %617 = vmatprep.subr.mxu0 0.0
  %618 = vmatpush1.msra.mxu0 0.0
  %619 = vmatprep.subr.mxu0 0.0
  %620 = vmatpush1.msra.mxu0 0.0
  %621 = vmatprep.subr.mxu0 0.0
  %622 = vmatpush1.msra.mxu0 0.0
  %623 = vmatprep.subr.mxu0 0.0
  %624 = vmatpush1.msra.mxu0 0.0
  %625 = vmatprep.subr.mxu0 0.0
  %626 = vmatpush1.msra.mxu0 0.0
  %627 = vmatprep.subr.mxu0 0.0
  %628 = vmatpush1.msra.mxu0 0.0
  %629 = vmatprep.subr.mxu0 0.0
  %630 = vmatpush1.msra.mxu0 0.0
  %631 = vmatprep.subr.mxu0 0.0
  %632 = vmatpush1.msra.mxu0 0.0
  %633 = vmatprep.subr.mxu0 0.0
  %634 = vmatpush1.msra.mxu0 0.0
  %635 = vmatprep.subr.mxu0 0.0
  %636 = vmatpush1.msra.mxu0 0.0
  %637 = vmatprep.subr.mxu0 0.0
  %638 = vmatpush1.msra.mxu0 0.0
  %639 = vmatprep.subr.mxu0 0.0
  %640 = vmatpush1.msra.mxu0 0.0
  %641 = vmatprep.subr.mxu0 0.0
  %642 = vmatpush1.msra.mxu0 0.0
  %643 = vmatprep.subr.mxu0 0.0
  %644 = vmatpush1.msra.mxu0 0.0
  %645 = vmatprep.subr.mxu0 0.0
  %646 = vmatpush1.msra.mxu0 0.0
  %647 = vmatprep.subr.mxu0 0.0
  %648 = vmatpush1.msra.mxu0 0.0
  %649 = vmatprep.subr.mxu0 0.0
  %650 = vmatpush1.msra.mxu0 0.0
  %651 = vmatprep.mubr.f32.mxu0 0.0
  %652 = vmatmul.mubr.f32.gmra.mrb[0].mxu0 %v445
  %v653 = vpop.f32.mrb[0].mxu0
  %v654 = vadd.f32 %v441, %v653
  %v655 = vpop.f32.mrb[0].mxu0
  %656 = vdwg.mxu0
  %v657 = vadd.f32 %v154, %v514
  %v658 = vxor.u32 %v657, 2147483648
  %v659 = vmul.f32 %v658, 1.442695
  %v660 = vpow.pop %v659
  %v661 = vadd.f32 %v660, 1.0
  %v662 = vrcp.pop %v661
  %v663 = vmul.f32 1.0, %v662
  %v664 = vadd.f32 %v270, %v584
  %v665 = vxor.u32 %v664, 2147483648
  %v666 = vmul.f32 %v665, 1.442695
  %v667 = vpow.pop %v666
  %v668 = vadd.f32 %v667, 1.0
  %v669 = vrcp.pop %v668
  %v670 = vmul.f32 1.0, %v669
  %v671 = vmul.f32 %v663, %v654
  %v672 = vadd.f32 %v386, %v671
  %v673 = vtanh.pop %v672
  %v674 = vsub.f32 1.0, %v670
  %v675 = vmul.f32 %v674, %v673
  %v676 = vmul.f32 %v670, 0.0
  %v677 = vadd.f32 %v675, %v676
  %vm678 = vcmp.gt.s32.totalorder %v443, 0
  %v679 = vsel %vm678, 1, 0
  %680 = vset.pattern.permute.xlu0 0
  %681 = vperm.xlu0 %680, %v679
  %v682 = vpop.permute.xlu0 %681
  %vm683 = vcmp.eq.s32.totalorder %v682, 1
  %v684 = vsel %vm683, %v677, 0.0
  %v686 = vsel %vm62, %v684, 0
  %688 = vmatprep.subr.mxu0 0.0
  %689 = vmatpush1.msra.mxu0 %v424
  %690 = vmatprep.subr.mxu0 0.0
  %691 = vmatpush1.msra.mxu0 %v425
  %692 = vmatprep.subr.mxu0 0.0
  %693 = vmatpush1.msra.mxu0 %v426
  %694 = vmatprep.subr.mxu0 0.0
  %695 = vmatpush1.msra.mxu0 %v427
  %696 = vmatprep.subr.mxu0 0.0
  %697 = vmatpush1.msra.mxu0 0.0
  %698 = vmatprep.subr.mxu0 0.0
  %699 = vmatpush1.msra.mxu0 0.0
  %700 = vmatprep.subr.mxu0 0.0
  %701 = vmatpush1.msra.mxu0 0.0
  %702 = vmatprep.subr.mxu0 0.0
  %703 = vmatpush1.msra.mxu0 0.0
  %704 = vmatprep.subr.mxu0 0.0
  %705 = vmatpush1.msra.mxu0 0.0
  %706 = vmatprep.subr.mxu0 0.0
  %707 = vmatpush1.msra.mxu0 0.0
  %708 = vmatprep.subr.mxu0 0.0
  %709 = vmatpush1.msra.mxu0 0.0
  %710 = vmatprep.subr.mxu0 0.0
  %711 = vmatpush1.msra.mxu0 0.0
  %712 = vmatprep.subr.mxu0 0.0
  %713 = vmatpush1.msra.mxu0 0.0
  %714 = vmatprep.subr.mxu0 0.0
  %715 = vmatpush1.msra.mxu0 0.0
  %716 = vmatprep.subr.mxu0 0.0
  %717 = vmatpush1.msra.mxu0 0.0
  %718 = vmatprep.subr.mxu0 0.0
  %719 = vmatpush1.msra.mxu0 0.0
  %720 = vmatprep.subr.mxu0 0.0
  %721 = vmatpush1.msra.mxu0 0.0
  %722 = vmatprep.subr.mxu0 0.0
  %723 = vmatpush1.msra.mxu0 0.0
  %724 = vmatprep.subr.mxu0 0.0
  %725 = vmatpush1.msra.mxu0 0.0
  %726 = vmatprep.subr.mxu0 0.0
  %727 = vmatpush1.msra.mxu0 0.0
  %728 = vmatprep.subr.mxu0 0.0
  %729 = vmatpush1.msra.mxu0 0.0
  %730 = vmatprep.subr.mxu0 0.0
  %731 = vmatpush1.msra.mxu0 0.0
  %732 = vmatprep.subr.mxu0 0.0
  %733 = vmatpush1.msra.mxu0 0.0
  %734 = vmatprep.subr.mxu0 0.0
  %735 = vmatpush1.msra.mxu0 0.0
  %736 = vmatprep.subr.mxu0 0.0
  %737 = vmatpush1.msra.mxu0 0.0
  %738 = vmatprep.subr.mxu0 0.0
  %739 = vmatpush1.msra.mxu0 0.0
  %740 = vmatprep.subr.mxu0 0.0
  %741 = vmatpush1.msra.mxu0 0.0
  %742 = vmatprep.subr.mxu0 0.0
  %743 = vmatpush1.msra.mxu0 0.0
  %744 = vmatprep.subr.mxu0 0.0
  %745 = vmatpush1.msra.mxu0 0.0
  %746 = vmatprep.subr.mxu0 0.0
  %747 = vmatpush1.msra.mxu0 0.0
  %748 = vmatprep.subr.mxu0 0.0
  %749 = vmatpush1.msra.mxu0 0.0
  %750 = vmatprep.subr.mxu0 0.0
  %751 = vmatpush1.msra.mxu0 0.0
  %752 = vmatprep.mubr.f32.mxu0 0.0
  %753 = vmatmul.mubr.f32.gmra.mrb[0].mxu0 %v686
  %v754 = vpop.f32.mrb[0].mxu0
  %v755 = vadd.f32 0.0, %v754
  %v756 = vpop.f32.mrb[0].mxu0
  %757 = vdwg.mxu0
  %758 = vmatprep.subr.mxu0 0.0
  %759 = vmatpush1.msra.mxu0 %v428
  %760 = vmatprep.subr.mxu0 0.0
  %761 = vmatpush1.msra.mxu0 %v429
  %762 = vmatprep.subr.mxu0 0.0
  %763 = vmatpush1.msra.mxu0 %v430
  %764 = vmatprep.subr.mxu0 0.0
  %765 = vmatpush1.msra.mxu0 %v431
  %766 = vmatprep.subr.mxu0 0.0
  %767 = vmatpush1.msra.mxu0 0.0
  %768 = vmatprep.subr.mxu0 0.0
  %769 = vmatpush1.msra.mxu0 0.0
  %770 = vmatprep.subr.mxu0 0.0
  %771 = vmatpush1.msra.mxu0 0.0
  %772 = vmatprep.subr.mxu0 0.0
  %773 = vmatpush1.msra.mxu0 0.0
  %774 = vmatprep.subr.mxu0 0.0
  %775 = vmatpush1.msra.mxu0 0.0
  %776 = vmatprep.subr.mxu0 0.0
  %777 = vmatpush1.msra.mxu0 0.0
  %778 = vmatprep.subr.mxu0 0.0
  %779 = vmatpush1.msra.mxu0 0.0
  %780 = vmatprep.subr.mxu0 0.0
  %781 = vmatpush1.msra.mxu0 0.0
  %782 = vmatprep.subr.mxu0 0.0
  %783 = vmatpush1.msra.mxu0 0.0
  %784 = vmatprep.subr.mxu0 0.0
  %785 = vmatpush1.msra.mxu0 0.0
  %786 = vmatprep.subr.mxu0 0.0
  %787 = vmatpush1.msra.mxu0 0.0
  %788 = vmatprep.subr.mxu0 0.0
  %789 = vmatpush1.msra.mxu0 0.0
  %790 = vmatprep.subr.mxu0 0.0
  %791 = vmatpush1.msra.mxu0 0.0
  %792 = vmatprep.subr.mxu0 0.0
  %793 = vmatpush1.msra.mxu0 0.0
  %794 = vmatprep.subr.mxu0 0.0
  %795 = vmatpush1.msra.mxu0 0.0
  %796 = vmatprep.subr.mxu0 0.0
  %797 = vmatpush1.msra.mxu0 0.0
  %798 = vmatprep.subr.mxu0 0.0
  %799 = vmatpush1.msra.mxu0 0.0
  %800 = vmatprep.subr.mxu0 0.0
  %801 = vmatpush1.msra.mxu0 0.0
  %802 = vmatprep.subr.mxu0 0.0
  %803 = vmatpush1.msra.mxu0 0.0
  %804 = vmatprep.subr.mxu0 0.0
  %805 = vmatpush1.msra.mxu0 0.0
  %806 = vmatprep.subr.mxu0 0.0
  %807 = vmatpush1.msra.mxu0 0.0
  %808 = vmatprep.subr.mxu0 0.0
  %809 = vmatpush1.msra.mxu0 0.0
  %810 = vmatprep.subr.mxu0 0.0
  %811 = vmatpush1.msra.mxu0 0.0
  %812 = vmatprep.subr.mxu0 0.0
  %813 = vmatpush1.msra.mxu0 0.0
  %814 = vmatprep.subr.mxu0 0.0
  %815 = vmatpush1.msra.mxu0 0.0
  %816 = vmatprep.subr.mxu0 0.0
  %817 = vmatpush1.msra.mxu0 0.0
  %818 = vmatprep.subr.mxu0 0.0
  %819 = vmatpush1.msra.mxu0 0.0
  %820 = vmatprep.subr.mxu0 0.0
  %821 = vmatpush1.msra.mxu0 0.0
  %822 = vmatprep.mubr.f32.mxu0 0.0
  %823 = vmatmul.mubr.f32.gmra.mrb[0].mxu0 %v686
  %v824 = vpop.f32.mrb[0].mxu0
  %v825 = vadd.f32 0.0, %v824
  %v826 = vpop.f32.mrb[0].mxu0
  %827 = vdwg.mxu0
  %828 = vmatprep.subr.mxu0 0.0
  %829 = vmatpush1.msra.mxu0 %v432
  %830 = vmatprep.subr.mxu0 0.0
  %831 = vmatpush1.msra.mxu0 %v433
  %832 = vmatprep.subr.mxu0 0.0
  %833 = vmatpush1.msra.mxu0 %v434
  %834 = vmatprep.subr.mxu0 0.0
  %835 = vmatpush1.msra.mxu0 %v435
  %836 = vmatprep.subr.mxu0 0.0
  %837 = vmatpush1.msra.mxu0 0.0
  %838 = vmatprep.subr.mxu0 0.0
  %839 = vmatpush1.msra.mxu0 0.0
  %840 = vmatprep.subr.mxu0 0.0
  %841 = vmatpush1.msra.mxu0 0.0
  %842 = vmatprep.subr.mxu0 0.0
  %843 = vmatpush1.msra.mxu0 0.0
  %844 = vmatprep.subr.mxu0 0.0
  %845 = vmatpush1.msra.mxu0 0.0
  %846 = vmatprep.subr.mxu0 0.0
  %847 = vmatpush1.msra.mxu0 0.0
  %848 = vmatprep.subr.mxu0 0.0
  %849 = vmatpush1.msra.mxu0 0.0
  %850 = vmatprep.subr.mxu0 0.0
  %851 = vmatpush1.msra.mxu0 0.0
  %852 = vmatprep.subr.mxu0 0.0
  %853 = vmatpush1.msra.mxu0 0.0
  %854 = vmatprep.subr.mxu0 0.0
  %855 = vmatpush1.msra.mxu0 0.0
  %856 = vmatprep.subr.mxu0 0.0
  %857 = vmatpush1.msra.mxu0 0.0
  %858 = vmatprep.subr.mxu0 0.0
  %859 = vmatpush1.msra.mxu0 0.0
  %860 = vmatprep.subr.mxu0 0.0
  %861 = vmatpush1.msra.mxu0 0.0
  %862 = vmatprep.subr.mxu0 0.0
  %863 = vmatpush1.msra.mxu0 0.0
  %864 = vmatprep.subr.mxu0 0.0
  %865 = vmatpush1.msra.mxu0 0.0
  %866 = vmatprep.subr.mxu0 0.0
  %867 = vmatpush1.msra.mxu0 0.0
  %868 = vmatprep.subr.mxu0 0.0
  %869 = vmatpush1.msra.mxu0 0.0
  %870 = vmatprep.subr.mxu0 0.0
  %871 = vmatpush1.msra.mxu0 0.0
  %872 = vmatprep.subr.mxu0 0.0
  %873 = vmatpush1.msra.mxu0 0.0
  %874 = vmatprep.subr.mxu0 0.0
  %875 = vmatpush1.msra.mxu0 0.0
  %876 = vmatprep.subr.mxu0 0.0
  %877 = vmatpush1.msra.mxu0 0.0
  %878 = vmatprep.subr.mxu0 0.0
  %879 = vmatpush1.msra.mxu0 0.0
  %880 = vmatprep.subr.mxu0 0.0
  %881 = vmatpush1.msra.mxu0 0.0
  %882 = vmatprep.subr.mxu0 0.0
  %883 = vmatpush1.msra.mxu0 0.0
  %884 = vmatprep.subr.mxu0 0.0
  %885 = vmatpush1.msra.mxu0 0.0
  %886 = vmatprep.subr.mxu0 0.0
  %887 = vmatpush1.msra.mxu0 0.0
  %888 = vmatprep.subr.mxu0 0.0
  %889 = vmatpush1.msra.mxu0 0.0
  %890 = vmatprep.subr.mxu0 0.0
  %891 = vmatpush1.msra.mxu0 0.0
  %892 = vmatprep.mubr.f32.mxu0 0.0
  %893 = vmatmul.mubr.f32.gmra.mrb[0].mxu0 %v686
  %v894 = vpop.f32.mrb[0].mxu0
  %v895 = vadd.f32 %v441, %v894
  %v896 = vpop.f32.mrb[0].mxu0
  %897 = vdwg.mxu0
  %v898 = vadd.f32 %v159, %v755
  %v899 = vxor.u32 %v898, 2147483648
  %v900 = vmul.f32 %v899, 1.442695
  %v901 = vpow.pop %v900
  %v902 = vadd.f32 %v901, 1.0
  %v903 = vrcp.pop %v902
  %v904 = vmul.f32 1.0, %v903
  %v905 = vadd.f32 %v275, %v825
  %v906 = vxor.u32 %v905, 2147483648
  %v907 = vmul.f32 %v906, 1.442695
  %v908 = vpow.pop %v907
  %v909 = vadd.f32 %v908, 1.0
  %v910 = vrcp.pop %v909
  %v911 = vmul.f32 1.0, %v910
  %v912 = vmul.f32 %v904, %v895
  %v913 = vadd.f32 %v391, %v912
  %v914 = vtanh.pop %v913
  %v915 = vsub.f32 1.0, %v911
  %v916 = vmul.f32 %v915, %v914
  %v917 = vmul.f32 %v911, %v684
  %v918 = vadd.f32 %v916, %v917
  %vm919 = vcmp.gt.s32.totalorder %v443, 1
  %v920 = vsel %vm919, 1, 0
  %921 = vset.pattern.permute.xlu0 0
  %922 = vperm.xlu0 %921, %v920
  %v923 = vpop.permute.xlu0 %922
  %vm924 = vcmp.eq.s32.totalorder %v923, 1
  %v925 = vsel %vm924, %v918, %v684
  %v926 = vsel %vm924, %v918, 0.0
  %v928 = vsel %vm62, %v925, 0
  %930 = vmatprep.subr.mxu0 0.0
  %931 = vmatpush1.msra.mxu0 %v424
  %932 = vmatprep.subr.mxu0 0.0
  %933 = vmatpush1.msra.mxu0 %v425
  %934 = vmatprep.subr.mxu0 0.0
  %935 = vmatpush1.msra.mxu0 %v426
  %936 = vmatprep.subr.mxu0 0.0
  %937 = vmatpush1.msra.mxu0 %v427
  %938 = vmatprep.subr.mxu0 0.0
  %939 = vmatpush1.msra.mxu0 0.0
  %940 = vmatprep.subr.mxu0 0.0
  %941 = vmatpush1.msra.mxu0 0.0
  %942 = vmatprep.subr.mxu0 0.0
  %943 = vmatpush1.msra.mxu0 0.0
  %944 = vmatprep.subr.mxu0 0.0
  %945 = vmatpush1.msra.mxu0 0.0
  %946 = vmatprep.subr.mxu0 0.0
  %947 = vmatpush1.msra.mxu0 0.0
  %948 = vmatprep.subr.mxu0 0.0
  %949 = vmatpush1.msra.mxu0 0.0
  %950 = vmatprep.subr.mxu0 0.0
  %951 = vmatpush1.msra.mxu0 0.0
  %952 = vmatprep.subr.mxu0 0.0
  %953 = vmatpush1.msra.mxu0 0.0
  %954 = vmatprep.subr.mxu0 0.0
  %955 = vmatpush1.msra.mxu0 0.0
  %956 = vmatprep.subr.mxu0 0.0
  %957 = vmatpush1.msra.mxu0 0.0
  %958 = vmatprep.subr.mxu0 0.0
  %959 = vmatpush1.msra.mxu0 0.0
  %960 = vmatprep.subr.mxu0 0.0
  %961 = vmatpush1.msra.mxu0 0.0
  %962 = vmatprep.subr.mxu0 0.0
  %963 = vmatpush1.msra.mxu0 0.0
  %964 = vmatprep.subr.mxu0 0.0
  %965 = vmatpush1.msra.mxu0 0.0
  %966 = vmatprep.subr.mxu0 0.0
  %967 = vmatpush1.msra.mxu0 0.0
  %968 = vmatprep.subr.mxu0 0.0
  %969 = vmatpush1.msra.mxu0 0.0
  %970 = vmatprep.subr.mxu0 0.0
  %971 = vmatpush1.msra.mxu0 0.0
  %972 = vmatprep.subr.mxu0 0.0
  %973 = vmatpush1.msra.mxu0 0.0
  %974 = vmatprep.subr.mxu0 0.0
  %975 = vmatpush1.msra.mxu0 0.0
  %976 = vmatprep.subr.mxu0 0.0
  %977 = vmatpush1.msra.mxu0 0.0
  %978 = vmatprep.subr.mxu0 0.0
  %979 = vmatpush1.msra.mxu0 0.0
  %980 = vmatprep.subr.mxu0 0.0
  %981 = vmatpush1.msra.mxu0 0.0
  %982 = vmatprep.subr.mxu0 0.0
  %983 = vmatpush1.msra.mxu0 0.0
  %984 = vmatprep.subr.mxu0 0.0
  %985 = vmatpush1.msra.mxu0 0.0
  %986 = vmatprep.subr.mxu0 0.0
  %987 = vmatpush1.msra.mxu0 0.0
  %988 = vmatprep.subr.mxu0 0.0
  %989 = vmatpush1.msra.mxu0 0.0
  %990 = vmatprep.subr.mxu0 0.0
  %991 = vmatpush1.msra.mxu0 0.0
  %992 = vmatprep.subr.mxu0 0.0
  %993 = vmatpush1.msra.mxu0 0.0
  %994 = vmatprep.mubr.f32.mxu0 0.0
  %995 = vmatmul.mubr.f32.gmra.mrb[0].mxu0 %v928
  %v996 = vpop.f32.mrb[0].mxu0
  %v997 = vadd.f32 0.0, %v996
  %v998 = vpop.f32.mrb[0].mxu0
  %999 = vdwg.mxu0
  %1000 = vmatprep.subr.mxu0 0.0
  %1001 = vmatpush1.msra.mxu0 %v428
  %1002 = vmatprep.subr.mxu0 0.0
  %1003 = vmatpush1.msra.mxu0 %v429
  %1004 = vmatprep.subr.mxu0 0.0
  %1005 = vmatpush1.msra.mxu0 %v430
  %1006 = vmatprep.subr.mxu0 0.0
  %1007 = vmatpush1.msra.mxu0 %v431
  %1008 = vmatprep.subr.mxu0 0.0
  %1009 = vmatpush1.msra.mxu0 0.0
  %1010 = vmatprep.subr.mxu0 0.0
  %1011 = vmatpush1.msra.mxu0 0.0
  %1012 = vmatprep.subr.mxu0 0.0
  %1013 = vmatpush1.msra.mxu0 0.0
  %1014 = vmatprep.subr.mxu0 0.0
  %1015 = vmatpush1.msra.mxu0 0.0
  %1016 = vmatprep.subr.mxu0 0.0
  %1017 = vmatpush1.msra.mxu0 0.0
  %1018 = vmatprep.subr.mxu0 0.0
  %1019 = vmatpush1.msra.mxu0 0.0
  %1020 = vmatprep.subr.mxu0 0.0
  %1021 = vmatpush1.msra.mxu0 0.0
  %1022 = vmatprep.subr.mxu0 0.0
  %1023 = vmatpush1.msra.mxu0 0.0
  %1024 = vmatprep.subr.mxu0 0.0
  %1025 = vmatpush1.msra.mxu0 0.0
  %1026 = vmatprep.subr.mxu0 0.0
  %1027 = vmatpush1.msra.mxu0 0.0
  %1028 = vmatprep.subr.mxu0 0.0
  %1029 = vmatpush1.msra.mxu0 0.0
  %1030 = vmatprep.subr.mxu0 0.0
  %1031 = vmatpush1.msra.mxu0 0.0
  %1032 = vmatprep.subr.mxu0 0.0
  %1033 = vmatpush1.msra.mxu0 0.0
  %1034 = vmatprep.subr.mxu0 0.0
  %1035 = vmatpush1.msra.mxu0 0.0
  %1036 = vmatprep.subr.mxu0 0.0
  %1037 = vmatpush1.msra.mxu0 0.0
  %1038 = vmatprep.subr.mxu0 0.0
  %1039 = vmatpush1.msra.mxu0 0.0
  %1040 = vmatprep.subr.mxu0 0.0
  %1041 = vmatpush1.msra.mxu0 0.0
  %1042 = vmatprep.subr.mxu0 0.0
  %1043 = vmatpush1.msra.mxu0 0.0
  %1044 = vmatprep.subr.mxu0 0.0
  %1045 = vmatpush1.msra.mxu0 0.0
  %1046 = vmatprep.subr.mxu0 0.0
  %1047 = vmatpush1.msra.mxu0 0.0
  %1048 = vmatprep.subr.mxu0 0.0
  %1049 = vmatpush1.msra.mxu0 0.0
  %1050 = vmatprep.subr.mxu0 0.0
  %1051 = vmatpush1.msra.mxu0 0.0
  %1052 = vmatprep.subr.mxu0 0.0
  %1053 = vmatpush1.msra.mxu0 0.0
  %1054 = vmatprep.subr.mxu0 0.0
  %1055 = vmatpush1.msra.mxu0 0.0
  %1056 = vmatprep.subr.mxu0 0.0
  %1057 = vmatpush1.msra.mxu0 0.0
  %1058 = vmatprep.subr.mxu0 0.0
  %1059 = vmatpush1.msra.mxu0 0.0
  %1060 = vmatprep.subr.mxu0 0.0
  %1061 = vmatpush1.msra.mxu0 0.0
  %1062 = vmatprep.subr.mxu0 0.0
  %1063 = vmatpush1.msra.mxu0 0.0
  %1064 = vmatprep.mubr.f32.mxu0 0.0
  %1065 = vmatmul.mubr.f32.gmra.mrb[0].mxu0 %v928
  %v1066 = vpop.f32.mrb[0].mxu0
  %v1067 = vadd.f32 0.0, %v1066
  %v1068 = vpop.f32.mrb[0].mxu0
  %1069 = vdwg.mxu0
  %1070 = vmatprep.subr.mxu0 0.0
  %1071 = vmatpush1.msra.mxu0 %v432
  %1072 = vmatprep.subr.mxu0 0.0
  %1073 = vmatpush1.msra.mxu0 %v433
  %1074 = vmatprep.subr.mxu0 0.0
  %1075 = vmatpush1.msra.mxu0 %v434
  %1076 = vmatprep.subr.mxu0 0.0
  %1077 = vmatpush1.msra.mxu0 %v435
  %1078 = vmatprep.subr.mxu0 0.0
  %1079 = vmatpush1.msra.mxu0 0.0
  %1080 = vmatprep.subr.mxu0 0.0
  %1081 = vmatpush1.msra.mxu0 0.0
  %1082 = vmatprep.subr.mxu0 0.0
  %1083 = vmatpush1.msra.mxu0 0.0
  %1084 = vmatprep.subr.mxu0 0.0
  %1085 = vmatpush1.msra.mxu0 0.0
  %1086 = vmatprep.subr.mxu0 0.0
  %1087 = vmatpush1.msra.mxu0 0.0
  %1088 = vmatprep.subr.mxu0 0.0
  %1089 = vmatpush1.msra.mxu0 0.0
  %1090 = vmatprep.subr.mxu0 0.0
  %1091 = vmatpush1.msra.mxu0 0.0
  %1092 = vmatprep.subr.mxu0 0.0
  %1093 = vmatpush1.msra.mxu0 0.0
  %1094 = vmatprep.subr.mxu0 0.0
  %1095 = vmatpush1.msra.mxu0 0.0
  %1096 = vmatprep.subr.mxu0 0.0
  %1097 = vmatpush1.msra.mxu0 0.0
  %1098 = vmatprep.subr.mxu0 0.0
  %1099 = vmatpush1.msra.mxu0 0.0
  %1100 = vmatprep.subr.mxu0 0.0
  %1101 = vmatpush1.msra.mxu0 0.0
  %1102 = vmatprep.subr.mxu0 0.0
  %1103 = vmatpush1.msra.mxu0 0.0
  %1104 = vmatprep.subr.mxu0 0.0
  %1105 = vmatpush1.msra.mxu0 0.0
  %1106 = vmatprep.subr.mxu0 0.0
  %1107 = vmatpush1.msra.mxu0 0.0
  %1108 = vmatprep.subr.mxu0 0.0
  %1109 = vmatpush1.msra.mxu0 0.0
  %1110 = vmatprep.subr.mxu0 0.0
  %1111 = vmatpush1.msra.mxu0 0.0
  %1112 = vmatprep.subr.mxu0 0.0
  %1113 = vmatpush1.msra.mxu0 0.0
  %1114 = vmatprep.subr.mxu0 0.0
  %1115 = vmatpush1.msra.mxu0 0.0
  %1116 = vmatprep.subr.mxu0 0.0
  %1117 = vmatpush1.msra.mxu0 0.0
  %1118 = vmatprep.subr.mxu0 0.0
  %1119 = vmatpush1.msra.mxu0 0.0
  %1120 = vmatprep.subr.mxu0 0.0
  %1121 = vmatpush1.msra.mxu0 0.0
  %1122 = vmatprep.subr.mxu0 0.0
  %1123 = vmatpush1.msra.mxu0 0.0
  %1124 = vmatprep.subr.mxu0 0.0
  %1125 = vmatpush1.msra.mxu0 0.0
  %1126 = vmatprep.subr.mxu0 0.0
  %1127 = vmatpush1.msra.mxu0 0.0
  %1128 = vmatprep.subr.mxu0 0.0
  %1129 = vmatpush1.msra.mxu0 0.0
  %1130 = vmatprep.subr.mxu0 0.0
  %1131 = vmatpush1.msra.mxu0 0.0
  %1132 = vmatprep.subr.mxu0 0.0
  %1133 = vmatpush1.msra.mxu0 0.0
  %1134 = vmatprep.mubr.f32.mxu0 0.0
  %1135 = vmatmul.mubr.f32.gmra.mrb[0].mxu0 %v928
  %v1136 = vpop.f32.mrb[0].mxu0
  %v1137 = vadd.f32 %v441, %v1136
  %v1138 = vpop.f32.mrb[0].mxu0
  %1139 = vdwg.mxu0
  %v1140 = vadd.f32 %v164, %v997
  %v1141 = vxor.u32 %v1140, 2147483648
  %v1142 = vmul.f32 %v1141, 1.442695
  %v1143 = vpow.pop %v1142
  %v1144 = vadd.f32 %v1143, 1.0
  %v1145 = vrcp.pop %v1144
  %v1146 = vmul.f32 1.0, %v1145
  %v1147 = vadd.f32 %v280, %v1067
  %v1148 = vxor.u32 %v1147, 2147483648
  %v1149 = vmul.f32 %v1148, 1.442695
  %v1150 = vpow.pop %v1149
  %v1151 = vadd.f32 %v1150, 1.0
  %v1152 = vrcp.pop %v1151
  %v1153 = vmul.f32 1.0, %v1152
  %v1154 = vmul.f32 %v1146, %v1137
  %v1155 = vadd.f32 %v396, %v1154
  %v1156 = vtanh.pop %v1155
  %v1157 = vsub.f32 1.0, %v1153
  %v1158 = vmul.f32 %v1157, %v1156
  %v1159 = vmul.f32 %v1153, %v925
  %v1160 = vadd.f32 %v1158, %v1159
  %vm1161 = vcmp.gt.s32.totalorder %v443, 2
  %v1162 = vsel %vm1161, 1, 0
  %1163 = vset.pattern.permute.xlu0 0
  %1164 = vperm.xlu0 %1163, %v1162
  %v1165 = vpop.permute.xlu0 %1164
  %vm1166 = vcmp.eq.s32.totalorder %v1165, 1
  %v1167 = vsel %vm1166, %v1160, %v925
  %v1168 = vsel %vm1166, %v1160, 0.0
  %v1170 = vsel %vm62, %v1167, 0
  %1172 = vmatprep.subr.mxu0 0.0
  %1173 = vmatpush1.msra.mxu0 %v424
  %1174 = vmatprep.subr.mxu0 0.0
  %1175 = vmatpush1.msra.mxu0 %v425
  %1176 = vmatprep.subr.mxu0 0.0
  %1177 = vmatpush1.msra.mxu0 %v426
  %1178 = vmatprep.subr.mxu0 0.0
  %1179 = vmatpush1.msra.mxu0 %v427
  %1180 = vmatprep.subr.mxu0 0.0
  %1181 = vmatpush1.msra.mxu0 0.0
  %1182 = vmatprep.subr.mxu0 0.0
  %1183 = vmatpush1.msra.mxu0 0.0
  %1184 = vmatprep.subr.mxu0 0.0
  %1185 = vmatpush1.msra.mxu0 0.0
  %1186 = vmatprep.subr.mxu0 0.0
  %1187 = vmatpush1.msra.mxu0 0.0
  %1188 = vmatprep.subr.mxu0 0.0
  %1189 = vmatpush1.msra.mxu0 0.0
  %1190 = vmatprep.subr.mxu0 0.0
  %1191 = vmatpush1.msra.mxu0 0.0
  %1192 = vmatprep.subr.mxu0 0.0
  %1193 = vmatpush1.msra.mxu0 0.0
  %1194 = vmatprep.subr.mxu0 0.0
  %1195 = vmatpush1.msra.mxu0 0.0
  %1196 = vmatprep.subr.mxu0 0.0
  %1197 = vmatpush1.msra.mxu0 0.0
  %1198 = vmatprep.subr.mxu0 0.0
  %1199 = vmatpush1.msra.mxu0 0.0
  %1200 = vmatprep.subr.mxu0 0.0
  %1201 = vmatpush1.msra.mxu0 0.0
  %1202 = vmatprep.subr.mxu0 0.0
  %1203 = vmatpush1.msra.mxu0 0.0
  %1204 = vmatprep.subr.mxu0 0.0
  %1205 = vmatpush1.msra.mxu0 0.0
  %1206 = vmatprep.subr.mxu0 0.0
  %1207 = vmatpush1.msra.mxu0 0.0
  %1208 = vmatprep.subr.mxu0 0.0
  %1209 = vmatpush1.msra.mxu0 0.0
  %1210 = vmatprep.subr.mxu0 0.0
  %1211 = vmatpush1.msra.mxu0 0.0
  %1212 = vmatprep.subr.mxu0 0.0
  %1213 = vmatpush1.msra.mxu0 0.0
  %1214 = vmatprep.subr.mxu0 0.0
  %1215 = vmatpush1.msra.mxu0 0.0
  %1216 = vmatprep.subr.mxu0 0.0
  %1217 = vmatpush1.msra.mxu0 0.0
  %1218 = vmatprep.subr.mxu0 0.0
  %1219 = vmatpush1.msra.mxu0 0.0
  %1220 = vmatprep.subr.mxu0 0.0
  %1221 = vmatpush1.msra.mxu0 0.0
  %1222 = vmatprep.subr.mxu0 0.0
  %1223 = vmatpush1.msra.mxu0 0.0
  %1224 = vmatprep.subr.mxu0 0.0
  %1225 = vmatpush1.msra.mxu0 0.0
  %1226 = vmatprep.subr.mxu0 0.0
  %1227 = vmatpush1.msra.mxu0 0.0
  %1228 = vmatprep.subr.mxu0 0.0
  %1229 = vmatpush1.msra.mxu0 0.0
  %1230 = vmatprep.subr.mxu0 0.0
  %1231 = vmatpush1.msra.mxu0 0.0
  %1232 = vmatprep.subr.mxu0 0.0
  %1233 = vmatpush1.msra.mxu0 0.0
  %1234 = vmatprep.subr.mxu0 0.0
  %1235 = vmatpush1.msra.mxu0 0.0
  %1236 = vmatprep.mubr.f32.mxu0 0.0
  %1237 = vmatmul.mubr.f32.gmra.mrb[0].mxu0 %v1170
  %v1238 = vpop.f32.mrb[0].mxu0
  %v1239 = vadd.f32 0.0, %v1238
  %v1240 = vpop.f32.mrb[0].mxu0
  %1241 = vdwg.mxu0
  %1242 = vmatprep.subr.mxu0 0.0
  %1243 = vmatpush1.msra.mxu0 %v428
  %1244 = vmatprep.subr.mxu0 0.0
  %1245 = vmatpush1.msra.mxu0 %v429
  %1246 = vmatprep.subr.mxu0 0.0
  %1247 = vmatpush1.msra.mxu0 %v430
  %1248 = vmatprep.subr.mxu0 0.0
  %1249 = vmatpush1.msra.mxu0 %v431
  %1250 = vmatprep.subr.mxu0 0.0
  %1251 = vmatpush1.msra.mxu0 0.0
  %1252 = vmatprep.subr.mxu0 0.0
  %1253 = vmatpush1.msra.mxu0 0.0
  %1254 = vmatprep.subr.mxu0 0.0
  %1255 = vmatpush1.msra.mxu0 0.0
  %1256 = vmatprep.subr.mxu0 0.0
  %1257 = vmatpush1.msra.mxu0 0.0
  %1258 = vmatprep.subr.mxu0 0.0
  %1259 = vmatpush1.msra.mxu0 0.0
  %1260 = vmatprep.subr.mxu0 0.0
  %1261 = vmatpush1.msra.mxu0 0.0
  %1262 = vmatprep.subr.mxu0 0.0
  %1263 = vmatpush1.msra.mxu0 0.0
  %1264 = vmatprep.subr.mxu0 0.0
  %1265 = vmatpush1.msra.mxu0 0.0
  %1266 = vmatprep.subr.mxu0 0.0
  %1267 = vmatpush1.msra.mxu0 0.0
  %1268 = vmatprep.subr.mxu0 0.0
  %1269 = vmatpush1.msra.mxu0 0.0
  %1270 = vmatprep.subr.mxu0 0.0
  %1271 = vmatpush1.msra.mxu0 0.0
  %1272 = vmatprep.subr.mxu0 0.0
  %1273 = vmatpush1.msra.mxu0 0.0
  %1274 = vmatprep.subr.mxu0 0.0
  %1275 = vmatpush1.msra.mxu0 0.0
  %1276 = vmatprep.subr.mxu0 0.0
  %1277 = vmatpush1.msra.mxu0 0.0
  %1278 = vmatprep.subr.mxu0 0.0
  %1279 = vmatpush1.msra.mxu0 0.0
  %1280 = vmatprep.subr.mxu0 0.0
  %1281 = vmatpush1.msra.mxu0 0.0
  %1282 = vmatprep.subr.mxu0 0.0
  %1283 = vmatpush1.msra.mxu0 0.0
  %1284 = vmatprep.subr.mxu0 0.0
  %1285 = vmatpush1.msra.mxu0 0.0
  %1286 = vmatprep.subr.mxu0 0.0
  %1287 = vmatpush1.msra.mxu0 0.0
  %1288 = vmatprep.subr.mxu0 0.0
  %1289 = vmatpush1.msra.mxu0 0.0
  %1290 = vmatprep.subr.mxu0 0.0
  %1291 = vmatpush1.msra.mxu0 0.0
  %1292 = vmatprep.subr.mxu0 0.0
  %1293 = vmatpush1.msra.mxu0 0.0
  %1294 = vmatprep.subr.mxu0 0.0
  %1295 = vmatpush1.msra.mxu0 0.0
  %1296 = vmatprep.subr.mxu0 0.0
  %1297 = vmatpush1.msra.mxu0 0.0
  %1298 = vmatprep.subr.mxu0 0.0
  %1299 = vmatpush1.msra.mxu0 0.0
  %1300 = vmatprep.subr.mxu0 0.0
  %1301 = vmatpush1.msra.mxu0 0.0
  %1302 = vmatprep.subr.mxu0 0.0
  %1303 = vmatpush1.msra.mxu0 0.0
  %1304 = vmatprep.subr.mxu0 0.0
  %1305 = vmatpush1.msra.mxu0 0.0
  %1306 = vmatprep.mubr.f32.mxu0 0.0
  %1307 = vmatmul.mubr.f32.gmra.mrb[0].mxu0 %v1170
  %v1308 = vpop.f32.mrb[0].mxu0
  %v1309 = vadd.f32 0.0, %v1308
  %v1310 = vpop.f32.mrb[0].mxu0
  %1311 = vdwg.mxu0
  %1312 = vmatprep.subr.mxu0 0.0
  %1313 = vmatpush1.msra.mxu0 %v432
  %1314 = vmatprep.subr.mxu0 0.0
  %1315 = vmatpush1.msra.mxu0 %v433
  %1316 = vmatprep.subr.mxu0 0.0
  %1317 = vmatpush1.msra.mxu0 %v434
  %1318 = vmatprep.subr.mxu0 0.0
  %1319 = vmatpush1.msra.mxu0 %v435
  %1320 = vmatprep.subr.mxu0 0.0
  %1321 = vmatpush1.msra.mxu0 0.0
  %1322 = vmatprep.subr.mxu0 0.0
  %1323 = vmatpush1.msra.mxu0 0.0
  %1324 = vmatprep.subr.mxu0 0.0
  %1325 = vmatpush1.msra.mxu0 0.0
  %1326 = vmatprep.subr.mxu0 0.0
  %1327 = vmatpush1.msra.mxu0 0.0
  %1328 = vmatprep.subr.mxu0 0.0
  %1329 = vmatpush1.msra.mxu0 0.0
  %1330 = vmatprep.subr.mxu0 0.0
  %1331 = vmatpush1.msra.mxu0 0.0
  %1332 = vmatprep.subr.mxu0 0.0
  %1333 = vmatpush1.msra.mxu0 0.0
  %1334 = vmatprep.subr.mxu0 0.0
  %1335 = vmatpush1.msra.mxu0 0.0
  %1336 = vmatprep.subr.mxu0 0.0
  %1337 = vmatpush1.msra.mxu0 0.0
  %1338 = vmatprep.subr.mxu0 0.0
  %1339 = vmatpush1.msra.mxu0 0.0
  %1340 = vmatprep.subr.mxu0 0.0
  %1341 = vmatpush1.msra.mxu0 0.0
  %1342 = vmatprep.subr.mxu0 0.0
  %1343 = vmatpush1.msra.mxu0 0.0
  %1344 = vmatprep.subr.mxu0 0.0
  %1345 = vmatpush1.msra.mxu0 0.0
  %1346 = vmatprep.subr.mxu0 0.0
  %1347 = vmatpush1.msra.mxu0 0.0
  %1348 = vmatprep.subr.mxu0 0.0
  %1349 = vmatpush1.msra.mxu0 0.0
  %1350 = vmatprep.subr.mxu0 0.0
  %1351 = vmatpush1.msra.mxu0 0.0
  %1352 = vmatprep.subr.mxu0 0.0
  %1353 = vmatpush1.msra.mxu0 0.0
  %1354 = vmatprep.subr.mxu0 0.0
  %1355 = vmatpush1.msra.mxu0 0.0
  %1356 = vmatprep.subr.mxu0 0.0
  %1357 = vmatpush1.msra.mxu0 0.0
  %1358 = vmatprep.subr.mxu0 0.0
  %1359 = vmatpush1.msra.mxu0 0.0
  %1360 = vmatprep.subr.mxu0 0.0
  %1361 = vmatpush1.msra.mxu0 0.0
  %1362 = vmatprep.subr.mxu0 0.0
  %1363 = vmatpush1.msra.mxu0 0.0
  %1364 = vmatprep.subr.mxu0 0.0
  %1365 = vmatpush1.msra.mxu0 0.0
  %1366 = vmatprep.subr.mxu0 0.0
  %1367 = vmatpush1.msra.mxu0 0.0
  %1368 = vmatprep.subr.mxu0 0.0
  %1369 = vmatpush1.msra.mxu0 0.0
  %1370 = vmatprep.subr.mxu0 0.0
  %1371 = vmatpush1.msra.mxu0 0.0
  %1372 = vmatprep.subr.mxu0 0.0
  %1373 = vmatpush1.msra.mxu0 0.0
  %1374 = vmatprep.subr.mxu0 0.0
  %1375 = vmatpush1.msra.mxu0 0.0
  %1376 = vmatprep.mubr.f32.mxu0 0.0
  %1377 = vmatmul.mubr.f32.gmra.mrb[0].mxu0 %v1170
  %v1378 = vpop.f32.mrb[0].mxu0
  %v1379 = vadd.f32 %v441, %v1378
  %v1380 = vpop.f32.mrb[0].mxu0
  %1381 = vdwg.mxu0
  %v1382 = vadd.f32 %v169, %v1239
  %v1383 = vxor.u32 %v1382, 2147483648
  %v1384 = vmul.f32 %v1383, 1.442695
  %v1385 = vpow.pop %v1384
  %v1386 = vadd.f32 %v1385, 1.0
  %v1387 = vrcp.pop %v1386
  %v1388 = vmul.f32 1.0, %v1387
  %v1389 = vadd.f32 %v285, %v1309
  %v1390 = vxor.u32 %v1389, 2147483648
  %v1391 = vmul.f32 %v1390, 1.442695
  %v1392 = vpow.pop %v1391
  %v1393 = vadd.f32 %v1392, 1.0
  %v1394 = vrcp.pop %v1393
  %v1395 = vmul.f32 1.0, %v1394
  %v1396 = vmul.f32 %v1388, %v1379
  %v1397 = vadd.f32 %v401, %v1396
  %v1398 = vtanh.pop %v1397
  %v1399 = vsub.f32 1.0, %v1395
  %v1400 = vmul.f32 %v1399, %v1398
  %v1401 = vmul.f32 %v1395, %v1167
  %v1402 = vadd.f32 %v1400, %v1401
  %vm1403 = vcmp.gt.s32.totalorder %v443, 3
  %v1404 = vsel %vm1403, 1, 0
  %1405 = vset.pattern.permute.xlu0 0
  %1406 = vperm.xlu0 %1405, %v1404
  %v1407 = vpop.permute.xlu0 %1406
  %vm1408 = vcmp.eq.s32.totalorder %v1407, 1
  %v1409 = vsel %vm1408, %v1402, %v1167
  %v1410 = vsel %vm1408, %v1402, 0.0
  %v1412 = vsel %vm62, %v1409, 0
  %1414 = vmatprep.subr.mxu0 0.0
  %1415 = vmatpush1.msra.mxu0 %v424
  %1416 = vmatprep.subr.mxu0 0.0
  %1417 = vmatpush1.msra.mxu0 %v425
  %1418 = vmatprep.subr.mxu0 0.0
  %1419 = vmatpush1.msra.mxu0 %v426
  %1420 = vmatprep.subr.mxu0 0.0
  %1421 = vmatpush1.msra.mxu0 %v427
  %1422 = vmatprep.subr.mxu0 0.0
  %1423 = vmatpush1.msra.mxu0 0.0
  %1424 = vmatprep.subr.mxu0 0.0
  %1425 = vmatpush1.msra.mxu0 0.0
  %1426 = vmatprep.subr.mxu0 0.0
  %1427 = vmatpush1.msra.mxu0 0.0
  %1428 = vmatprep.subr.mxu0 0.0
  %1429 = vmatpush1.msra.mxu0 0.0
  %1430 = vmatprep.subr.mxu0 0.0
  %1431 = vmatpush1.msra.mxu0 0.0
  %1432 = vmatprep.subr.mxu0 0.0
  %1433 = vmatpush1.msra.mxu0 0.0
  %1434 = vmatprep.subr.mxu0 0.0
  %1435 = vmatpush1.msra.mxu0 0.0
  %1436 = vmatprep.subr.mxu0 0.0
  %1437 = vmatpush1.msra.mxu0 0.0
  %1438 = vmatprep.subr.mxu0 0.0
  %1439 = vmatpush1.msra.mxu0 0.0
  %1440 = vmatprep.subr.mxu0 0.0
  %1441 = vmatpush1.msra.mxu0 0.0
  %1442 = vmatprep.subr.mxu0 0.0
  %1443 = vmatpush1.msra.mxu0 0.0
  %1444 = vmatprep.subr.mxu0 0.0
  %1445 = vmatpush1.msra.mxu0 0.0
  %1446 = vmatprep.subr.mxu0 0.0
  %1447 = vmatpush1.msra.mxu0 0.0
  %1448 = vmatprep.subr.mxu0 0.0
  %1449 = vmatpush1.msra.mxu0 0.0
  %1450 = vmatprep.subr.mxu0 0.0
  %1451 = vmatpush1.msra.mxu0 0.0
  %1452 = vmatprep.subr.mxu0 0.0
  %1453 = vmatpush1.msra.mxu0 0.0
  %1454 = vmatprep.subr.mxu0 0.0
  %1455 = vmatpush1.msra.mxu0 0.0
  %1456 = vmatprep.subr.mxu0 0.0
  %1457 = vmatpush1.msra.mxu0 0.0
  %1458 = vmatprep.subr.mxu0 0.0
  %1459 = vmatpush1.msra.mxu0 0.0
  %1460 = vmatprep.subr.mxu0 0.0
  %1461 = vmatpush1.msra.mxu0 0.0
  %1462 = vmatprep.subr.mxu0 0.0
  %1463 = vmatpush1.msra.mxu0 0.0
  %1464 = vmatprep.subr.mxu0 0.0
  %1465 = vmatpush1.msra.mxu0 0.0
  %1466 = vmatprep.subr.mxu0 0.0
  %1467 = vmatpush1.msra.mxu0 0.0
  %1468 = vmatprep.subr.mxu0 0.0
  %1469 = vmatpush1.msra.mxu0 0.0
  %1470 = vmatprep.subr.mxu0 0.0
  %1471 = vmatpush1.msra.mxu0 0.0
  %1472 = vmatprep.subr.mxu0 0.0
  %1473 = vmatpush1.msra.mxu0 0.0
  %1474 = vmatprep.subr.mxu0 0.0
  %1475 = vmatpush1.msra.mxu0 0.0
  %1476 = vmatprep.subr.mxu0 0.0
  %1477 = vmatpush1.msra.mxu0 0.0
  %1478 = vmatprep.mubr.f32.mxu0 0.0
  %1479 = vmatmul.mubr.f32.gmra.mrb[0].mxu0 %v1412
  %v1480 = vpop.f32.mrb[0].mxu0
  %v1481 = vadd.f32 0.0, %v1480
  %v1482 = vpop.f32.mrb[0].mxu0
  %1483 = vdwg.mxu0
  %1484 = vmatprep.subr.mxu0 0.0
  %1485 = vmatpush1.msra.mxu0 %v428
  %1486 = vmatprep.subr.mxu0 0.0
  %1487 = vmatpush1.msra.mxu0 %v429
  %1488 = vmatprep.subr.mxu0 0.0
  %1489 = vmatpush1.msra.mxu0 %v430
  %1490 = vmatprep.subr.mxu0 0.0
  %1491 = vmatpush1.msra.mxu0 %v431
  %1492 = vmatprep.subr.mxu0 0.0
  %1493 = vmatpush1.msra.mxu0 0.0
  %1494 = vmatprep.subr.mxu0 0.0
  %1495 = vmatpush1.msra.mxu0 0.0
  %1496 = vmatprep.subr.mxu0 0.0
  %1497 = vmatpush1.msra.mxu0 0.0
  %1498 = vmatprep.subr.mxu0 0.0
  %1499 = vmatpush1.msra.mxu0 0.0
  %1500 = vmatprep.subr.mxu0 0.0
  %1501 = vmatpush1.msra.mxu0 0.0
  %1502 = vmatprep.subr.mxu0 0.0
  %1503 = vmatpush1.msra.mxu0 0.0
  %1504 = vmatprep.subr.mxu0 0.0
  %1505 = vmatpush1.msra.mxu0 0.0
  %1506 = vmatprep.subr.mxu0 0.0
  %1507 = vmatpush1.msra.mxu0 0.0
  %1508 = vmatprep.subr.mxu0 0.0
  %1509 = vmatpush1.msra.mxu0 0.0
  %1510 = vmatprep.subr.mxu0 0.0
  %1511 = vmatpush1.msra.mxu0 0.0
  %1512 = vmatprep.subr.mxu0 0.0
  %1513 = vmatpush1.msra.mxu0 0.0
  %1514 = vmatprep.subr.mxu0 0.0
  %1515 = vmatpush1.msra.mxu0 0.0
  %1516 = vmatprep.subr.mxu0 0.0
  %1517 = vmatpush1.msra.mxu0 0.0
  %1518 = vmatprep.subr.mxu0 0.0
  %1519 = vmatpush1.msra.mxu0 0.0
  %1520 = vmatprep.subr.mxu0 0.0
  %1521 = vmatpush1.msra.mxu0 0.0
  %1522 = vmatprep.subr.mxu0 0.0
  %1523 = vmatpush1.msra.mxu0 0.0
  %1524 = vmatprep.subr.mxu0 0.0
  %1525 = vmatpush1.msra.mxu0 0.0
  %1526 = vmatprep.subr.mxu0 0.0
  %1527 = vmatpush1.msra.mxu0 0.0
  %1528 = vmatprep.subr.mxu0 0.0
  %1529 = vmatpush1.msra.mxu0 0.0
  %1530 = vmatprep.subr.mxu0 0.0
  %1531 = vmatpush1.msra.mxu0 0.0
  %1532 = vmatprep.subr.mxu0 0.0
  %1533 = vmatpush1.msra.mxu0 0.0
  %1534 = vmatprep.subr.mxu0 0.0
  %1535 = vmatpush1.msra.mxu0 0.0
  %1536 = vmatprep.subr.mxu0 0.0
  %1537 = vmatpush1.msra.mxu0 0.0
  %1538 = vmatprep.subr.mxu0 0.0
  %1539 = vmatpush1.msra.mxu0 0.0
  %1540 = vmatprep.subr.mxu0 0.0
  %1541 = vmatpush1.msra.mxu0 0.0
  %1542 = vmatprep.subr.mxu0 0.0
  %1543 = vmatpush1.msra.mxu0 0.0
  %1544 = vmatprep.subr.mxu0 0.0
  %1545 = vmatpush1.msra.mxu0 0.0
  %1546 = vmatprep.subr.mxu0 0.0
  %1547 = vmatpush1.msra.mxu0 0.0
  %1548 = vmatprep.mubr.f32.mxu0 0.0
  %1549 = vmatmul.mubr.f32.gmra.mrb[0].mxu0 %v1412
  %v1550 = vpop.f32.mrb[0].mxu0
  %v1551 = vadd.f32 0.0, %v1550
  %v1552 = vpop.f32.mrb[0].mxu0
  %1553 = vdwg.mxu0
  %1554 = vmatprep.subr.mxu0 0.0
  %1555 = vmatpush1.msra.mxu0 %v432
  %1556 = vmatprep.subr.mxu0 0.0
  %1557 = vmatpush1.msra.mxu0 %v433
  %1558 = vmatprep.subr.mxu0 0.0
  %1559 = vmatpush1.msra.mxu0 %v434
  %1560 = vmatprep.subr.mxu0 0.0
  %1561 = vmatpush1.msra.mxu0 %v435
  %1562 = vmatprep.subr.mxu0 0.0
  %1563 = vmatpush1.msra.mxu0 0.0
  %1564 = vmatprep.subr.mxu0 0.0
  %1565 = vmatpush1.msra.mxu0 0.0
  %1566 = vmatprep.subr.mxu0 0.0
  %1567 = vmatpush1.msra.mxu0 0.0
  %1568 = vmatprep.subr.mxu0 0.0
  %1569 = vmatpush1.msra.mxu0 0.0
  %1570 = vmatprep.subr.mxu0 0.0
  %1571 = vmatpush1.msra.mxu0 0.0
  %1572 = vmatprep.subr.mxu0 0.0
  %1573 = vmatpush1.msra.mxu0 0.0
  %1574 = vmatprep.subr.mxu0 0.0
  %1575 = vmatpush1.msra.mxu0 0.0
  %1576 = vmatprep.subr.mxu0 0.0
  %1577 = vmatpush1.msra.mxu0 0.0
  %1578 = vmatprep.subr.mxu0 0.0
  %1579 = vmatpush1.msra.mxu0 0.0
  %1580 = vmatprep.subr.mxu0 0.0
  %1581 = vmatpush1.msra.mxu0 0.0
  %1582 = vmatprep.subr.mxu0 0.0
  %1583 = vmatpush1.msra.mxu0 0.0
  %1584 = vmatprep.subr.mxu0 0.0
  %1585 = vmatpush1.msra.mxu0 0.0
  %1586 = vmatprep.subr.mxu0 0.0
  %1587 = vmatpush1.msra.mxu0 0.0
  %1588 = vmatprep.subr.mxu0 0.0
  %1589 = vmatpush1.msra.mxu0 0.0
  %1590 = vmatprep.subr.mxu0 0.0
  %1591 = vmatpush1.msra.mxu0 0.0
  %1592 = vmatprep.subr.mxu0 0.0
  %1593 = vmatpush1.msra.mxu0 0.0
  %1594 = vmatprep.subr.mxu0 0.0
  %1595 = vmatpush1.msra.mxu0 0.0
  %1596 = vmatprep.subr.mxu0 0.0
  %1597 = vmatpush1.msra.mxu0 0.0
  %1598 = vmatprep.subr.mxu0 0.0
  %1599 = vmatpush1.msra.mxu0 0.0
  %1600 = vmatprep.subr.mxu0 0.0
  %1601 = vmatpush1.msra.mxu0 0.0
  %1602 = vmatprep.subr.mxu0 0.0
  %1603 = vmatpush1.msra.mxu0 0.0
  %1604 = vmatprep.subr.mxu0 0.0
  %1605 = vmatpush1.msra.mxu0 0.0
  %1606 = vmatprep.subr.mxu0 0.0
  %1607 = vmatpush1.msra.mxu0 0.0
  %1608 = vmatprep.subr.mxu0 0.0
  %1609 = vmatpush1.msra.mxu0 0.0
  %1610 = vmatprep.subr.mxu0 0.0
  %1611 = vmatpush1.msra.mxu0 0.0
  %1612 = vmatprep.subr.mxu0 0.0
  %1613 = vmatpush1.msra.mxu0 0.0
  %1614 = vmatprep.subr.mxu0 0.0
  %1615 = vmatpush1.msra.mxu0 0.0
  %1616 = vmatprep.subr.mxu0 0.0
  %1617 = vmatpush1.msra.mxu0 0.0
  %1618 = vmatprep.mubr.f32.mxu0 0.0
  %1619 = vmatmul.mubr.f32.gmra.mrb[0].mxu0 %v1412
  %v1620 = vpop.f32.mrb[0].mxu0
  %v1621 = vadd.f32 %v441, %v1620
  %v1622 = vpop.f32.mrb[0].mxu0
  %1623 = vdwg.mxu0
  %v1624 = vadd.f32 %v174, %v1481
  %v1625 = vxor.u32 %v1624, 2147483648
  %v1626 = vmul.f32 %v1625, 1.442695
  %v1627 = vpow.pop %v1626
  %v1628 = vadd.f32 %v1627, 1.0
  %v1629 = vrcp.pop %v1628
  %v1630 = vmul.f32 1.0, %v1629
  %v1631 = vadd.f32 %v290, %v1551
  %v1632 = vxor.u32 %v1631, 2147483648
  %v1633 = vmul.f32 %v1632, 1.442695
  %v1634 = vpow.pop %v1633
  %v1635 = vadd.f32 %v1634, 1.0
  %v1636 = vrcp.pop %v1635
  %v1637 = vmul.f32 1.0, %v1636
  %v1638 = vmul.f32 %v1630, %v1621
  %v1639 = vadd.f32 %v406, %v1638
  %v1640 = vtanh.pop %v1639
  %v1641 = vsub.f32 1.0, %v1637
  %v1642 = vmul.f32 %v1641, %v1640
  %v1643 = vmul.f32 %v1637, %v1409
  %v1644 = vadd.f32 %v1642, %v1643
  %vm1645 = vcmp.gt.s32.totalorder %v443, 4
  %v1646 = vsel %vm1645, 1, 0
  %1647 = vset.pattern.permute.xlu0 0
  %1648 = vperm.xlu0 %1647, %v1646
  %v1649 = vpop.permute.xlu0 %1648
  %vm1650 = vcmp.eq.s32.totalorder %v1649, 1
  %v1651 = vsel %vm1650, %v1644, %v1409
  %v1652 = vsel %vm1650, %v1644, 0.0
  %v1654 = vsel %vm62, %v1651, 0
  %1656 = vmatprep.subr.mxu0 0.0
  %1657 = vmatpush1.msra.mxu0 %v424
  %1658 = vmatprep.subr.mxu0 0.0
  %1659 = vmatpush1.msra.mxu0 %v425
  %1660 = vmatprep.subr.mxu0 0.0
  %1661 = vmatpush1.msra.mxu0 %v426
  %1662 = vmatprep.subr.mxu0 0.0
  %1663 = vmatpush1.msra.mxu0 %v427
  %1664 = vmatprep.subr.mxu0 0.0
  %1665 = vmatpush1.msra.mxu0 0.0
  %1666 = vmatprep.subr.mxu0 0.0
  %1667 = vmatpush1.msra.mxu0 0.0
  %1668 = vmatprep.subr.mxu0 0.0
  %1669 = vmatpush1.msra.mxu0 0.0
  %1670 = vmatprep.subr.mxu0 0.0
  %1671 = vmatpush1.msra.mxu0 0.0
  %1672 = vmatprep.subr.mxu0 0.0
  %1673 = vmatpush1.msra.mxu0 0.0
  %1674 = vmatprep.subr.mxu0 0.0
  %1675 = vmatpush1.msra.mxu0 0.0
  %1676 = vmatprep.subr.mxu0 0.0
  %1677 = vmatpush1.msra.mxu0 0.0
  %1678 = vmatprep.subr.mxu0 0.0
  %1679 = vmatpush1.msra.mxu0 0.0
  %1680 = vmatprep.subr.mxu0 0.0
  %1681 = vmatpush1.msra.mxu0 0.0
  %1682 = vmatprep.subr.mxu0 0.0
  %1683 = vmatpush1.msra.mxu0 0.0
  %1684 = vmatprep.subr.mxu0 0.0
  %1685 = vmatpush1.msra.mxu0 0.0
  %1686 = vmatprep.subr.mxu0 0.0
  %1687 = vmatpush1.msra.mxu0 0.0
  %1688 = vmatprep.subr.mxu0 0.0
  %1689 = vmatpush1.msra.mxu0 0.0
  %1690 = vmatprep.subr.mxu0 0.0
  %1691 = vmatpush1.msra.mxu0 0.0
  %1692 = vmatprep.subr.mxu0 0.0
  %1693 = vmatpush1.msra.mxu0 0.0
  %1694 = vmatprep.subr.mxu0 0.0
  %1695 = vmatpush1.msra.mxu0 0.0
  %1696 = vmatprep.subr.mxu0 0.0
  %1697 = vmatpush1.msra.mxu0 0.0
  %1698 = vmatprep.subr.mxu0 0.0
  %1699 = vmatpush1.msra.mxu0 0.0
  %1700 = vmatprep.subr.mxu0 0.0
  %1701 = vmatpush1.msra.mxu0 0.0
  %1702 = vmatprep.subr.mxu0 0.0
  %1703 = vmatpush1.msra.mxu0 0.0
  %1704 = vmatprep.subr.mxu0 0.0
  %1705 = vmatpush1.msra.mxu0 0.0
  %1706 = vmatprep.subr.mxu0 0.0
  %1707 = vmatpush1.msra.mxu0 0.0
  %1708 = vmatprep.subr.mxu0 0.0
  %1709 = vmatpush1.msra.mxu0 0.0
  %1710 = vmatprep.subr.mxu0 0.0
  %1711 = vmatpush1.msra.mxu0 0.0
  %1712 = vmatprep.subr.mxu0 0.0
  %1713 = vmatpush1.msra.mxu0 0.0
  %1714 = vmatprep.subr.mxu0 0.0
  %1715 = vmatpush1.msra.mxu0 0.0
  %1716 = vmatprep.subr.mxu0 0.0
  %1717 = vmatpush1.msra.mxu0 0.0
  %1718 = vmatprep.subr.mxu0 0.0
  %1719 = vmatpush1.msra.mxu0 0.0
  %1720 = vmatprep.mubr.f32.mxu0 0.0
  %1721 = vmatmul.mubr.f32.gmra.mrb[0].mxu0 %v1654
  %v1722 = vpop.f32.mrb[0].mxu0
  %v1723 = vadd.f32 0.0, %v1722
  %v1724 = vpop.f32.mrb[0].mxu0
  %1725 = vdwg.mxu0
  %1726 = vmatprep.subr.mxu0 0.0
  %1727 = vmatpush1.msra.mxu0 %v428
  %1728 = vmatprep.subr.mxu0 0.0
  %1729 = vmatpush1.msra.mxu0 %v429
  %1730 = vmatprep.subr.mxu0 0.0
  %1731 = vmatpush1.msra.mxu0 %v430
  %1732 = vmatprep.subr.mxu0 0.0
  %1733 = vmatpush1.msra.mxu0 %v431
  %1734 = vmatprep.subr.mxu0 0.0
  %1735 = vmatpush1.msra.mxu0 0.0
  %1736 = vmatprep.subr.mxu0 0.0
  %1737 = vmatpush1.msra.mxu0 0.0
  %1738 = vmatprep.subr.mxu0 0.0
  %1739 = vmatpush1.msra.mxu0 0.0
  %1740 = vmatprep.subr.mxu0 0.0
  %1741 = vmatpush1.msra.mxu0 0.0
  %1742 = vmatprep.subr.mxu0 0.0
  %1743 = vmatpush1.msra.mxu0 0.0
  %1744 = vmatprep.subr.mxu0 0.0
  %1745 = vmatpush1.msra.mxu0 0.0
  %1746 = vmatprep.subr.mxu0 0.0
  %1747 = vmatpush1.msra.mxu0 0.0
  %1748 = vmatprep.subr.mxu0 0.0
  %1749 = vmatpush1.msra.mxu0 0.0
  %1750 = vmatprep.subr.mxu0 0.0
  %1751 = vmatpush1.msra.mxu0 0.0
  %1752 = vmatprep.subr.mxu0 0.0
  %1753 = vmatpush1.msra.mxu0 0.0
  %1754 = vmatprep.subr.mxu0 0.0
  %1755 = vmatpush1.msra.mxu0 0.0
  %1756 = vmatprep.subr.mxu0 0.0
  %1757 = vmatpush1.msra.mxu0 0.0
  %1758 = vmatprep.subr.mxu0 0.0
  %1759 = vmatpush1.msra.mxu0 0.0
  %1760 = vmatprep.subr.mxu0 0.0
  %1761 = vmatpush1.msra.mxu0 0.0
  %1762 = vmatprep.subr.mxu0 0.0
  %1763 = vmatpush1.msra.mxu0 0.0
  %1764 = vmatprep.subr.mxu0 0.0
  %1765 = vmatpush1.msra.mxu0 0.0
  %1766 = vmatprep.subr.mxu0 0.0
  %1767 = vmatpush1.msra.mxu0 0.0
  %1768 = vmatprep.subr.mxu0 0.0
  %1769 = vmatpush1.msra.mxu0 0.0
  %1770 = vmatprep.subr.mxu0 0.0
  %1771 = vmatpush1.msra.mxu0 0.0
  %1772 = vmatprep.subr.mxu0 0.0
  %1773 = vmatpush1.msra.mxu0 0.0
  %1774 = vmatprep.subr.mxu0 0.0
  %1775 = vmatpush1.msra.mxu0 0.0
  %1776 = vmatprep.subr.mxu0 0.0
  %1777 = vmatpush1.msra.mxu0 0.0
  %1778 = vmatprep.subr.mxu0 0.0
  %1779 = vmatpush1.msra.mxu0 0.0
  %1780 = vmatprep.subr.mxu0 0.0
  %1781 = vmatpush1.msra.mxu0 0.0
  %1782 = vmatprep.subr.mxu0 0.0
  %1783 = vmatpush1.msra.mxu0 0.0
  %1784 = vmatprep.subr.mxu0 0.0
  %1785 = vmatpush1.msra.mxu0 0.0
  %1786 = vmatprep.subr.mxu0 0.0
  %1787 = vmatpush1.msra.mxu0 0.0
  %1788 = vmatprep.subr.mxu0 0.0
  %1789 = vmatpush1.msra.mxu0 0.0
  %1790 = vmatprep.mubr.f32.mxu0 0.0
  %1791 = vmatmul.mubr.f32.gmra.mrb[0].mxu0 %v1654
  %v1792 = vpop.f32.mrb[0].mxu0
  %v1793 = vadd.f32 0.0, %v1792
  %v1794 = vpop.f32.mrb[0].mxu0
  %1795 = vdwg.mxu0
  %1796 = vmatprep.subr.mxu0 0.0
  %1797 = vmatpush1.msra.mxu0 %v432
  %1798 = vmatprep.subr.mxu0 0.0
  %1799 = vmatpush1.msra.mxu0 %v433
  %1800 = vmatprep.subr.mxu0 0.0
  %1801 = vmatpush1.msra.mxu0 %v434
  %1802 = vmatprep.subr.mxu0 0.0
  %1803 = vmatpush1.msra.mxu0 %v435
  %1804 = vmatprep.subr.mxu0 0.0
  %1805 = vmatpush1.msra.mxu0 0.0
  %1806 = vmatprep.subr.mxu0 0.0
  %1807 = vmatpush1.msra.mxu0 0.0
  %1808 = vmatprep.subr.mxu0 0.0
  %1809 = vmatpush1.msra.mxu0 0.0
  %1810 = vmatprep.subr.mxu0 0.0
  %1811 = vmatpush1.msra.mxu0 0.0
  %1812 = vmatprep.subr.mxu0 0.0
  %1813 = vmatpush1.msra.mxu0 0.0
  %1814 = vmatprep.subr.mxu0 0.0
  %1815 = vmatpush1.msra.mxu0 0.0
  %1816 = vmatprep.subr.mxu0 0.0
  %1817 = vmatpush1.msra.mxu0 0.0
  %1818 = vmatprep.subr.mxu0 0.0
  %1819 = vmatpush1.msra.mxu0 0.0
  %1820 = vmatprep.subr.mxu0 0.0
  %1821 = vmatpush1.msra.mxu0 0.0
  %1822 = vmatprep.subr.mxu0 0.0
  %1823 = vmatpush1.msra.mxu0 0.0
  %1824 = vmatprep.subr.mxu0 0.0
  %1825 = vmatpush1.msra.mxu0 0.0
  %1826 = vmatprep.subr.mxu0 0.0
  %1827 = vmatpush1.msra.mxu0 0.0
  %1828 = vmatprep.subr.mxu0 0.0
  %1829 = vmatpush1.msra.mxu0 0.0
  %1830 = vmatprep.subr.mxu0 0.0
  %1831 = vmatpush1.msra.mxu0 0.0
  %1832 = vmatprep.subr.mxu0 0.0
  %1833 = vmatpush1.msra.mxu0 0.0
  %1834 = vmatprep.subr.mxu0 0.0
  %1835 = vmatpush1.msra.mxu0 0.0
  %1836 = vmatprep.subr.mxu0 0.0
  %1837 = vmatpush1.msra.mxu0 0.0
  %1838 = vmatprep.subr.mxu0 0.0
  %1839 = vmatpush1.msra.mxu0 0.0
  %1840 = vmatprep.subr.mxu0 0.0
  %1841 = vmatpush1.msra.mxu0 0.0
  %1842 = vmatprep.subr.mxu0 0.0
  %1843 = vmatpush1.msra.mxu0 0.0
  %1844 = vmatprep.subr.mxu0 0.0
  %1845 = vmatpush1.msra.mxu0 0.0
  %1846 = vmatprep.subr.mxu0 0.0
  %1847 = vmatpush1.msra.mxu0 0.0
  %1848 = vmatprep.subr.mxu0 0.0
  %1849 = vmatpush1.msra.mxu0 0.0
  %1850 = vmatprep.subr.mxu0 0.0
  %1851 = vmatpush1.msra.mxu0 0.0
  %1852 = vmatprep.subr.mxu0 0.0
  %1853 = vmatpush1.msra.mxu0 0.0
  %1854 = vmatprep.subr.mxu0 0.0
  %1855 = vmatpush1.msra.mxu0 0.0
  %1856 = vmatprep.subr.mxu0 0.0
  %1857 = vmatpush1.msra.mxu0 0.0
  %1858 = vmatprep.subr.mxu0 0.0
  %1859 = vmatpush1.msra.mxu0 0.0
  %1860 = vmatprep.mubr.f32.mxu0 0.0
  %1861 = vmatmul.mubr.f32.gmra.mrb[0].mxu0 %v1654
  %v1862 = vpop.f32.mrb[0].mxu0
  %v1863 = vadd.f32 %v441, %v1862
  %v1864 = vpop.f32.mrb[0].mxu0
  %1865 = vdwg.mxu0
  %v1866 = vadd.f32 %v179, %v1723
  %v1867 = vxor.u32 %v1866, 2147483648
  %v1868 = vmul.f32 %v1867, 1.442695
  %v1869 = vpow.pop %v1868
  %v1870 = vadd.f32 %v1869, 1.0
  %v1871 = vrcp.pop %v1870
  %v1872 = vmul.f32 1.0, %v1871
  %v1873 = vadd.f32 %v295, %v1793
  %v1874 = vxor.u32 %v1873, 2147483648
  %v1875 = vmul.f32 %v1874, 1.442695
  %v1876 = vpow.pop %v1875
  %v1877 = vadd.f32 %v1876, 1.0
  %v1878 = vrcp.pop %v1877
  %v1879 = vmul.f32 1.0, %v1878
  %v1880 = vmul.f32 %v1872, %v1863
  %v1881 = vadd.f32 %v411, %v1880
  %v1882 = vtanh.pop %v1881
  %v1883 = vsub.f32 1.0, %v1879
  %v1884 = vmul.f32 %v1883, %v1882
  %v1885 = vmul.f32 %v1879, %v1651
  %v1886 = vadd.f32 %v1884, %v1885
  %vm1887 = vcmp.gt.s32.totalorder %v443, 5
  %v1888 = vsel %vm1887, 1, 0
  %1889 = vset.pattern.permute.xlu0 0
  %1890 = vperm.xlu0 %1889, %v1888
  %v1891 = vpop.permute.xlu0 %1890
  %vm1892 = vcmp.eq.s32.totalorder %v1891, 1
  %v1893 = vsel %vm1892, %v1886, %v1651
  %v1894 = vsel %vm1892, %v1886, 0.0
  %v1896 = vsel %vm62, %v1893, 0
  %1898 = vmatprep.subr.mxu0 0.0
  %1899 = vmatpush1.msra.mxu0 %v424
  %1900 = vmatprep.subr.mxu0 0.0
  %1901 = vmatpush1.msra.mxu0 %v425
  %1902 = vmatprep.subr.mxu0 0.0
  %1903 = vmatpush1.msra.mxu0 %v426
  %1904 = vmatprep.subr.mxu0 0.0
  %1905 = vmatpush1.msra.mxu0 %v427
  %1906 = vmatprep.subr.mxu0 0.0
  %1907 = vmatpush1.msra.mxu0 0.0
  %1908 = vmatprep.subr.mxu0 0.0
  %1909 = vmatpush1.msra.mxu0 0.0
  %1910 = vmatprep.subr.mxu0 0.0
  %1911 = vmatpush1.msra.mxu0 0.0
  %1912 = vmatprep.subr.mxu0 0.0
  %1913 = vmatpush1.msra.mxu0 0.0
  %1914 = vmatprep.subr.mxu0 0.0
  %1915 = vmatpush1.msra.mxu0 0.0
  %1916 = vmatprep.subr.mxu0 0.0
  %1917 = vmatpush1.msra.mxu0 0.0
  %1918 = vmatprep.subr.mxu0 0.0
  %1919 = vmatpush1.msra.mxu0 0.0
  %1920 = vmatprep.subr.mxu0 0.0
  %1921 = vmatpush1.msra.mxu0 0.0
  %1922 = vmatprep.subr.mxu0 0.0
  %1923 = vmatpush1.msra.mxu0 0.0
  %1924 = vmatprep.subr.mxu0 0.0
  %1925 = vmatpush1.msra.mxu0 0.0
  %1926 = vmatprep.subr.mxu0 0.0
  %1927 = vmatpush1.msra.mxu0 0.0
  %1928 = vmatprep.subr.mxu0 0.0
  %1929 = vmatpush1.msra.mxu0 0.0
  %1930 = vmatprep.subr.mxu0 0.0
  %1931 = vmatpush1.msra.mxu0 0.0
  %1932 = vmatprep.subr.mxu0 0.0
  %1933 = vmatpush1.msra.mxu0 0.0
  %1934 = vmatprep.subr.mxu0 0.0
  %1935 = vmatpush1.msra.mxu0 0.0
  %1936 = vmatprep.subr.mxu0 0.0
  %1937 = vmatpush1.msra.mxu0 0.0
  %1938 = vmatprep.subr.mxu0 0.0
  %1939 = vmatpush1.msra.mxu0 0.0
  %1940 = vmatprep.subr.mxu0 0.0
  %1941 = vmatpush1.msra.mxu0 0.0
  %1942 = vmatprep.subr.mxu0 0.0
  %1943 = vmatpush1.msra.mxu0 0.0
  %1944 = vmatprep.subr.mxu0 0.0
  %1945 = vmatpush1.msra.mxu0 0.0
  %1946 = vmatprep.subr.mxu0 0.0
  %1947 = vmatpush1.msra.mxu0 0.0
  %1948 = vmatprep.subr.mxu0 0.0
  %1949 = vmatpush1.msra.mxu0 0.0
  %1950 = vmatprep.subr.mxu0 0.0
  %1951 = vmatpush1.msra.mxu0 0.0
  %1952 = vmatprep.subr.mxu0 0.0
  %1953 = vmatpush1.msra.mxu0 0.0
  %1954 = vmatprep.subr.mxu0 0.0
  %1955 = vmatpush1.msra.mxu0 0.0
  %1956 = vmatprep.subr.mxu0 0.0
  %1957 = vmatpush1.msra.mxu0 0.0
  %1958 = vmatprep.subr.mxu0 0.0
  %1959 = vmatpush1.msra.mxu0 0.0
  %1960 = vmatprep.subr.mxu0 0.0
  %1961 = vmatpush1.msra.mxu0 0.0
  %1962 = vmatprep.mubr.f32.mxu0 0.0
  %1963 = vmatmul.mubr.f32.gmra.mrb[0].mxu0 %v1896
  %v1964 = vpop.f32.mrb[0].mxu0
  %v1965 = vadd.f32 0.0, %v1964
  %v1966 = vpop.f32.mrb[0].mxu0
  %1967 = vdwg.mxu0
  %1968 = vmatprep.subr.mxu0 0.0
  %1969 = vmatpush1.msra.mxu0 %v428
  %1970 = vmatprep.subr.mxu0 0.0
  %1971 = vmatpush1.msra.mxu0 %v429
  %1972 = vmatprep.subr.mxu0 0.0
  %1973 = vmatpush1.msra.mxu0 %v430
  %1974 = vmatprep.subr.mxu0 0.0
  %1975 = vmatpush1.msra.mxu0 %v431
  %1976 = vmatprep.subr.mxu0 0.0
  %1977 = vmatpush1.msra.mxu0 0.0
  %1978 = vmatprep.subr.mxu0 0.0
  %1979 = vmatpush1.msra.mxu0 0.0
  %1980 = vmatprep.subr.mxu0 0.0
  %1981 = vmatpush1.msra.mxu0 0.0
  %1982 = vmatprep.subr.mxu0 0.0
  %1983 = vmatpush1.msra.mxu0 0.0
  %1984 = vmatprep.subr.mxu0 0.0
  %1985 = vmatpush1.msra.mxu0 0.0
  %1986 = vmatprep.subr.mxu0 0.0
  %1987 = vmatpush1.msra.mxu0 0.0
  %1988 = vmatprep.subr.mxu0 0.0
  %1989 = vmatpush1.msra.mxu0 0.0
  %1990 = vmatprep.subr.mxu0 0.0
  %1991 = vmatpush1.msra.mxu0 0.0
  %1992 = vmatprep.subr.mxu0 0.0
  %1993 = vmatpush1.msra.mxu0 0.0
  %1994 = vmatprep.subr.mxu0 0.0
  %1995 = vmatpush1.msra.mxu0 0.0
  %1996 = vmatprep.subr.mxu0 0.0
  %1997 = vmatpush1.msra.mxu0 0.0
  %1998 = vmatprep.subr.mxu0 0.0
  %1999 = vmatpush1.msra.mxu0 0.0
  %2000 = vmatprep.subr.mxu0 0.0
  %2001 = vmatpush1.msra.mxu0 0.0
  %2002 = vmatprep.subr.mxu0 0.0
  %2003 = vmatpush1.msra.mxu0 0.0
  %2004 = vmatprep.subr.mxu0 0.0
  %2005 = vmatpush1.msra.mxu0 0.0
  %2006 = vmatprep.subr.mxu0 0.0
  %2007 = vmatpush1.msra.mxu0 0.0
  %2008 = vmatprep.subr.mxu0 0.0
  %2009 = vmatpush1.msra.mxu0 0.0
  %2010 = vmatprep.subr.mxu0 0.0
  %2011 = vmatpush1.msra.mxu0 0.0
  %2012 = vmatprep.subr.mxu0 0.0
  %2013 = vmatpush1.msra.mxu0 0.0
  %2014 = vmatprep.subr.mxu0 0.0
  %2015 = vmatpush1.msra.mxu0 0.0
  %2016 = vmatprep.subr.mxu0 0.0
  %2017 = vmatpush1.msra.mxu0 0.0
  %2018 = vmatprep.subr.mxu0 0.0
  %2019 = vmatpush1.msra.mxu0 0.0
  %2020 = vmatprep.subr.mxu0 0.0
  %2021 = vmatpush1.msra.mxu0 0.0
  %2022 = vmatprep.subr.mxu0 0.0
  %2023 = vmatpush1.msra.mxu0 0.0
  %2024 = vmatprep.subr.mxu0 0.0
  %2025 = vmatpush1.msra.mxu0 0.0
  %2026 = vmatprep.subr.mxu0 0.0
  %2027 = vmatpush1.msra.mxu0 0.0
  %2028 = vmatprep.subr.mxu0 0.0
  %2029 = vmatpush1.msra.mxu0 0.0
  %2030 = vmatprep.subr.mxu0 0.0
  %2031 = vmatpush1.msra.mxu0 0.0
  %2032 = vmatprep.mubr.f32.mxu0 0.0
  %2033 = vmatmul.mubr.f32.gmra.mrb[0].mxu0 %v1896
  %v2034 = vpop.f32.mrb[0].mxu0
  %v2035 = vadd.f32 0.0, %v2034
  %v2036 = vpop.f32.mrb[0].mxu0
  %2037 = vdwg.mxu0
  %2038 = vmatprep.subr.mxu0 0.0
  %2039 = vmatpush1.msra.mxu0 %v432
  %2040 = vmatprep.subr.mxu0 0.0
  %2041 = vmatpush1.msra.mxu0 %v433
  %2042 = vmatprep.subr.mxu0 0.0
  %2043 = vmatpush1.msra.mxu0 %v434
  %2044 = vmatprep.subr.mxu0 0.0
  %2045 = vmatpush1.msra.mxu0 %v435
  %2046 = vmatprep.subr.mxu0 0.0
  %2047 = vmatpush1.msra.mxu0 0.0
  %2048 = vmatprep.subr.mxu0 0.0
  %2049 = vmatpush1.msra.mxu0 0.0
  %2050 = vmatprep.subr.mxu0 0.0
  %2051 = vmatpush1.msra.mxu0 0.0
  %2052 = vmatprep.subr.mxu0 0.0
  %2053 = vmatpush1.msra.mxu0 0.0
  %2054 = vmatprep.subr.mxu0 0.0
  %2055 = vmatpush1.msra.mxu0 0.0
  %2056 = vmatprep.subr.mxu0 0.0
  %2057 = vmatpush1.msra.mxu0 0.0
  %2058 = vmatprep.subr.mxu0 0.0
  %2059 = vmatpush1.msra.mxu0 0.0
  %2060 = vmatprep.subr.mxu0 0.0
  %2061 = vmatpush1.msra.mxu0 0.0
  %2062 = vmatprep.subr.mxu0 0.0
  %2063 = vmatpush1.msra.mxu0 0.0
  %2064 = vmatprep.subr.mxu0 0.0
  %2065 = vmatpush1.msra.mxu0 0.0
  %2066 = vmatprep.subr.mxu0 0.0
  %2067 = vmatpush1.msra.mxu0 0.0
  %2068 = vmatprep.subr.mxu0 0.0
  %2069 = vmatpush1.msra.mxu0 0.0
  %2070 = vmatprep.subr.mxu0 0.0
  %2071 = vmatpush1.msra.mxu0 0.0
  %2072 = vmatprep.subr.mxu0 0.0
  %2073 = vmatpush1.msra.mxu0 0.0
  %2074 = vmatprep.subr.mxu0 0.0
  %2075 = vmatpush1.msra.mxu0 0.0
  %2076 = vmatprep.subr.mxu0 0.0
  %2077 = vmatpush1.msra.mxu0 0.0
  %2078 = vmatprep.subr.mxu0 0.0
  %2079 = vmatpush1.msra.mxu0 0.0
  %2080 = vmatprep.subr.mxu0 0.0
  %2081 = vmatpush1.msra.mxu0 0.0
  %2082 = vmatprep.subr.mxu0 0.0
  %2083 = vmatpush1.msra.mxu0 0.0
  %2084 = vmatprep.subr.mxu0 0.0
  %2085 = vmatpush1.msra.mxu0 0.0
  %2086 = vmatprep.subr.mxu0 0.0
  %2087 = vmatpush1.msra.mxu0 0.0
  %2088 = vmatprep.subr.mxu0 0.0
  %2089 = vmatpush1.msra.mxu0 0.0
  %2090 = vmatprep.subr.mxu0 0.0
  %2091 = vmatpush1.msra.mxu0 0.0
  %2092 = vmatprep.subr.mxu0 0.0
  %2093 = vmatpush1.msra.mxu0 0.0
  %2094 = vmatprep.subr.mxu0 0.0
  %2095 = vmatpush1.msra.mxu0 0.0
  %2096 = vmatprep.subr.mxu0 0.0
  %2097 = vmatpush1.msra.mxu0 0.0
  %2098 = vmatprep.subr.mxu0 0.0
  %2099 = vmatpush1.msra.mxu0 0.0
  %2100 = vmatprep.subr.mxu0 0.0
  %2101 = vmatpush1.msra.mxu0 0.0
  %2102 = vmatprep.mubr.f32.mxu0 0.0
  %2103 = vmatmul.mubr.f32.gmra.mrb[0].mxu0 %v1896
  %v2104 = vpop.f32.mrb[0].mxu0
  %v2105 = vadd.f32 %v441, %v2104
  %v2106 = vpop.f32.mrb[0].mxu0
  %2107 = vdwg.mxu0
  %v2108 = vadd.f32 %v184, %v1965
  %v2109 = vxor.u32 %v2108, 2147483648
  %v2110 = vmul.f32 %v2109, 1.442695
  %v2111 = vpow.pop %v2110
  %v2112 = vadd.f32 %v2111, 1.0
  %v2113 = vrcp.pop %v2112
  %v2114 = vmul.f32 1.0, %v2113
  %v2115 = vadd.f32 %v300, %v2035
  %v2116 = vxor.u32 %v2115, 2147483648
  %v2117 = vmul.f32 %v2116, 1.442695
  %v2118 = vpow.pop %v2117
  %v2119 = vadd.f32 %v2118, 1.0
  %v2120 = vrcp.pop %v2119
  %v2121 = vmul.f32 1.0, %v2120
  %v2122 = vmul.f32 %v2114, %v2105
  %v2123 = vadd.f32 %v416, %v2122
  %v2124 = vtanh.pop %v2123
  %v2125 = vsub.f32 1.0, %v2121
  %v2126 = vmul.f32 %v2125, %v2124
  %v2127 = vmul.f32 %v2121, %v1893
  %v2128 = vadd.f32 %v2126, %v2127
  %vm2129 = vcmp.gt.s32.totalorder %v443, 6
  %v2130 = vsel %vm2129, 1, 0
  %2131 = vset.pattern.permute.xlu0 0
  %2132 = vperm.xlu0 %2131, %v2130
  %v2133 = vpop.permute.xlu0 %2132
  %vm2134 = vcmp.eq.s32.totalorder %v2133, 1
  %v2135 = vsel %vm2134, %v2128, %v1893
  %v2136 = vsel %vm2134, %v2128, 0.0
  %v2138 = vsel %vm62, %v2135, 0
  %2140 = vmatprep.subr.mxu0 0.0
  %2141 = vmatpush1.msra.mxu0 %v424
  %2142 = vmatprep.subr.mxu0 0.0
  %2143 = vmatpush1.msra.mxu0 %v425
  %2144 = vmatprep.subr.mxu0 0.0
  %2145 = vmatpush1.msra.mxu0 %v426
  %2146 = vmatprep.subr.mxu0 0.0
  %2147 = vmatpush1.msra.mxu0 %v427
  %2148 = vmatprep.subr.mxu0 0.0
  %2149 = vmatpush1.msra.mxu0 0.0
  %2150 = vmatprep.subr.mxu0 0.0
  %2151 = vmatpush1.msra.mxu0 0.0
  %2152 = vmatprep.subr.mxu0 0.0
  %2153 = vmatpush1.msra.mxu0 0.0
  %2154 = vmatprep.subr.mxu0 0.0
  %2155 = vmatpush1.msra.mxu0 0.0
  %2156 = vmatprep.subr.mxu0 0.0
  %2157 = vmatpush1.msra.mxu0 0.0
  %2158 = vmatprep.subr.mxu0 0.0
  %2159 = vmatpush1.msra.mxu0 0.0
  %2160 = vmatprep.subr.mxu0 0.0
  %2161 = vmatpush1.msra.mxu0 0.0
  %2162 = vmatprep.subr.mxu0 0.0
  %2163 = vmatpush1.msra.mxu0 0.0
  %2164 = vmatprep.subr.mxu0 0.0
  %2165 = vmatpush1.msra.mxu0 0.0
  %2166 = vmatprep.subr.mxu0 0.0
  %2167 = vmatpush1.msra.mxu0 0.0
  %2168 = vmatprep.subr.mxu0 0.0
  %2169 = vmatpush1.msra.mxu0 0.0
  %2170 = vmatprep.subr.mxu0 0.0
  %2171 = vmatpush1.msra.mxu0 0.0
  %2172 = vmatprep.subr.mxu0 0.0
  %2173 = vmatpush1.msra.mxu0 0.0
  %2174 = vmatprep.subr.mxu0 0.0
  %2175 = vmatpush1.msra.mxu0 0.0
  %2176 = vmatprep.subr.mxu0 0.0
  %2177 = vmatpush1.msra.mxu0 0.0
  %2178 = vmatprep.subr.mxu0 0.0
  %2179 = vmatpush1.msra.mxu0 0.0
  %2180 = vmatprep.subr.mxu0 0.0
  %2181 = vmatpush1.msra.mxu0 0.0
  %2182 = vmatprep.subr.mxu0 0.0
  %2183 = vmatpush1.msra.mxu0 0.0
  %2184 = vmatprep.subr.mxu0 0.0
  %2185 = vmatpush1.msra.mxu0 0.0
  %2186 = vmatprep.subr.mxu0 0.0
  %2187 = vmatpush1.msra.mxu0 0.0
  %2188 = vmatprep.subr.mxu0 0.0
  %2189 = vmatpush1.msra.mxu0 0.0
  %2190 = vmatprep.subr.mxu0 0.0
  %2191 = vmatpush1.msra.mxu0 0.0
  %2192 = vmatprep.subr.mxu0 0.0
  %2193 = vmatpush1.msra.mxu0 0.0
  %2194 = vmatprep.subr.mxu0 0.0
  %2195 = vmatpush1.msra.mxu0 0.0
  %2196 = vmatprep.subr.mxu0 0.0
  %2197 = vmatpush1.msra.mxu0 0.0
  %2198 = vmatprep.subr.mxu0 0.0
  %2199 = vmatpush1.msra.mxu0 0.0
  %2200 = vmatprep.subr.mxu0 0.0
  %2201 = vmatpush1.msra.mxu0 0.0
  %2202 = vmatprep.subr.mxu0 0.0
  %2203 = vmatpush1.msra.mxu0 0.0
  %2204 = vmatprep.mubr.f32.mxu0 0.0
  %2205 = vmatmul.mubr.f32.gmra.mrb[0].mxu0 %v2138
  %v2206 = vpop.f32.mrb[0].mxu0
  %v2207 = vadd.f32 0.0, %v2206
  %v2208 = vpop.f32.mrb[0].mxu0
  %2209 = vdwg.mxu0
  %2210 = vmatprep.subr.mxu0 0.0
  %2211 = vmatpush1.msra.mxu0 %v428
  %2212 = vmatprep.subr.mxu0 0.0
  %2213 = vmatpush1.msra.mxu0 %v429
  %2214 = vmatprep.subr.mxu0 0.0
  %2215 = vmatpush1.msra.mxu0 %v430
  %2216 = vmatprep.subr.mxu0 0.0
  %2217 = vmatpush1.msra.mxu0 %v431
  %2218 = vmatprep.subr.mxu0 0.0
  %2219 = vmatpush1.msra.mxu0 0.0
  %2220 = vmatprep.subr.mxu0 0.0
  %2221 = vmatpush1.msra.mxu0 0.0
  %2222 = vmatprep.subr.mxu0 0.0
  %2223 = vmatpush1.msra.mxu0 0.0
  %2224 = vmatprep.subr.mxu0 0.0
  %2225 = vmatpush1.msra.mxu0 0.0
  %2226 = vmatprep.subr.mxu0 0.0
  %2227 = vmatpush1.msra.mxu0 0.0
  %2228 = vmatprep.subr.mxu0 0.0
  %2229 = vmatpush1.msra.mxu0 0.0
  %2230 = vmatprep.subr.mxu0 0.0
  %2231 = vmatpush1.msra.mxu0 0.0
  %2232 = vmatprep.subr.mxu0 0.0
  %2233 = vmatpush1.msra.mxu0 0.0
  %2234 = vmatprep.subr.mxu0 0.0
  %2235 = vmatpush1.msra.mxu0 0.0
  %2236 = vmatprep.subr.mxu0 0.0
  %2237 = vmatpush1.msra.mxu0 0.0
  %2238 = vmatprep.subr.mxu0 0.0
  %2239 = vmatpush1.msra.mxu0 0.0
  %2240 = vmatprep.subr.mxu0 0.0
  %2241 = vmatpush1.msra.mxu0 0.0
  %2242 = vmatprep.subr.mxu0 0.0
  %2243 = vmatpush1.msra.mxu0 0.0
  %2244 = vmatprep.subr.mxu0 0.0
  %2245 = vmatpush1.msra.mxu0 0.0
  %2246 = vmatprep.subr.mxu0 0.0
  %2247 = vmatpush1.msra.mxu0 0.0
  %2248 = vmatprep.subr.mxu0 0.0
  %2249 = vmatpush1.msra.mxu0 0.0
  %2250 = vmatprep.subr.mxu0 0.0
  %2251 = vmatpush1.msra.mxu0 0.0
  %2252 = vmatprep.subr.mxu0 0.0
  %2253 = vmatpush1.msra.mxu0 0.0
  %2254 = vmatprep.subr.mxu0 0.0
  %2255 = vmatpush1.msra.mxu0 0.0
  %2256 = vmatprep.subr.mxu0 0.0
  %2257 = vmatpush1.msra.mxu0 0.0
  %2258 = vmatprep.subr.mxu0 0.0
  %2259 = vmatpush1.msra.mxu0 0.0
  %2260 = vmatprep.subr.mxu0 0.0
  %2261 = vmatpush1.msra.mxu0 0.0
  %2262 = vmatprep.subr.mxu0 0.0
  %2263 = vmatpush1.msra.mxu0 0.0
  %2264 = vmatprep.subr.mxu0 0.0
  %2265 = vmatpush1.msra.mxu0 0.0
  %2266 = vmatprep.subr.mxu0 0.0
  %2267 = vmatpush1.msra.mxu0 0.0
  %2268 = vmatprep.subr.mxu0 0.0
  %2269 = vmatpush1.msra.mxu0 0.0
  %2270 = vmatprep.subr.mxu0 0.0
  %2271 = vmatpush1.msra.mxu0 0.0
  %2272 = vmatprep.subr.mxu0 0.0
  %2273 = vmatpush1.msra.mxu0 0.0
  %2274 = vmatprep.mubr.f32.mxu0 0.0
  %2275 = vmatmul.mubr.f32.gmra.mrb[0].mxu0 %v2138
  %v2276 = vpop.f32.mrb[0].mxu0
  %v2277 = vadd.f32 0.0, %v2276
  %v2278 = vpop.f32.mrb[0].mxu0
  %2279 = vdwg.mxu0
  %2280 = vmatprep.subr.mxu0 0.0
  %2281 = vmatpush1.msra.mxu0 %v432
  %2282 = vmatprep.subr.mxu0 0.0
  %2283 = vmatpush1.msra.mxu0 %v433
  %2284 = vmatprep.subr.mxu0 0.0
  %2285 = vmatpush1.msra.mxu0 %v434
  %2286 = vmatprep.subr.mxu0 0.0
  %2287 = vmatpush1.msra.mxu0 %v435
  %2288 = vmatprep.subr.mxu0 0.0
  %2289 = vmatpush1.msra.mxu0 0.0
  %2290 = vmatprep.subr.mxu0 0.0
  %2291 = vmatpush1.msra.mxu0 0.0
  %2292 = vmatprep.subr.mxu0 0.0
  %2293 = vmatpush1.msra.mxu0 0.0
  %2294 = vmatprep.subr.mxu0 0.0
  %2295 = vmatpush1.msra.mxu0 0.0
  %2296 = vmatprep.subr.mxu0 0.0
  %2297 = vmatpush1.msra.mxu0 0.0
  %2298 = vmatprep.subr.mxu0 0.0
  %2299 = vmatpush1.msra.mxu0 0.0
  %2300 = vmatprep.subr.mxu0 0.0
  %2301 = vmatpush1.msra.mxu0 0.0
  %2302 = vmatprep.subr.mxu0 0.0
  %2303 = vmatpush1.msra.mxu0 0.0
  %2304 = vmatprep.subr.mxu0 0.0
  %2305 = vmatpush1.msra.mxu0 0.0
  %2306 = vmatprep.subr.mxu0 0.0
  %2307 = vmatpush1.msra.mxu0 0.0
  %2308 = vmatprep.subr.mxu0 0.0
  %2309 = vmatpush1.msra.mxu0 0.0
  %2310 = vmatprep.subr.mxu0 0.0
  %2311 = vmatpush1.msra.mxu0 0.0
  %2312 = vmatprep.subr.mxu0 0.0
  %2313 = vmatpush1.msra.mxu0 0.0
  %2314 = vmatprep.subr.mxu0 0.0
  %2315 = vmatpush1.msra.mxu0 0.0
  %2316 = vmatprep.subr.mxu0 0.0
  %2317 = vmatpush1.msra.mxu0 0.0
  %2318 = vmatprep.subr.mxu0 0.0
  %2319 = vmatpush1.msra.mxu0 0.0
  %2320 = vmatprep.subr.mxu0 0.0
  %2321 = vmatpush1.msra.mxu0 0.0
  %2322 = vmatprep.subr.mxu0 0.0
  %2323 = vmatpush1.msra.mxu0 0.0
  %2324 = vmatprep.subr.mxu0 0.0
  %2325 = vmatpush1.msra.mxu0 0.0
  %2326 = vmatprep.subr.mxu0 0.0
  %2327 = vmatpush1.msra.mxu0 0.0
  %2328 = vmatprep.subr.mxu0 0.0
  %2329 = vmatpush1.msra.mxu0 0.0
  %2330 = vmatprep.subr.mxu0 0.0
  %2331 = vmatpush1.msra.mxu0 0.0
  %2332 = vmatprep.subr.mxu0 0.0
  %2333 = vmatpush1.msra.mxu0 0.0
  %2334 = vmatprep.subr.mxu0 0.0
  %2335 = vmatpush1.msra.mxu0 0.0
  %2336 = vmatprep.subr.mxu0 0.0
  %2337 = vmatpush1.msra.mxu0 0.0
  %2338 = vmatprep.subr.mxu0 0.0
  %2339 = vmatpush1.msra.mxu0 0.0
  %2340 = vmatprep.subr.mxu0 0.0
  %2341 = vmatpush1.msra.mxu0 0.0
  %2342 = vmatprep.subr.mxu0 0.0
  %2343 = vmatpush1.msra.mxu0 0.0
  %2344 = vmatprep.mubr.f32.mxu0 0.0
  %2345 = vmatmul.mubr.f32.gmra.mrb[0].mxu0 %v2138
  %v2346 = vpop.f32.mrb[0].mxu0
  %v2347 = vadd.f32 %v441, %v2346
  %v2348 = vpop.f32.mrb[0].mxu0
  %2349 = vdwg.mxu0
  %v2350 = vadd.f32 %v189, %v2207
  %v2351 = vxor.u32 %v2350, 2147483648
  %v2352 = vmul.f32 %v2351, 1.442695
  %v2353 = vpow.pop %v2352
  %v2354 = vadd.f32 %v2353, 1.0
  %v2355 = vrcp.pop %v2354
  %v2356 = vmul.f32 1.0, %v2355
  %v2357 = vadd.f32 %v305, %v2277
  %v2358 = vxor.u32 %v2357, 2147483648
  %v2359 = vmul.f32 %v2358, 1.442695
  %v2360 = vpow.pop %v2359
  %v2361 = vadd.f32 %v2360, 1.0
  %v2362 = vrcp.pop %v2361
  %v2363 = vmul.f32 1.0, %v2362
  %v2364 = vmul.f32 %v2356, %v2347
  %v2365 = vadd.f32 %v421, %v2364
  %v2366 = vtanh.pop %v2365
  %v2367 = vsub.f32 1.0, %v2363
  %v2368 = vmul.f32 %v2367, %v2366
  %v2369 = vmul.f32 %v2363, %v2135
  %v2370 = vadd.f32 %v2368, %v2369
  %vm2371 = vcmp.gt.s32.totalorder %v443, 7
  %v2372 = vsel %vm2371, 1, 0
  %2373 = vset.pattern.permute.xlu0 0
  %2374 = vperm.xlu0 %2373, %v2372
  %v2375 = vpop.permute.xlu0 %2374
  %vm2376 = vcmp.eq.s32.totalorder %v2375, 1
  %v2377 = vsel %vm2376, %v2370, %v2135
  %v2378 = vsel %vm2376, %v2370, 0.0
  %2380 = vrot.lane.b32.xlu0 %v926, 32
  %v2381 = vpop.permute.xlu0 %2380
  %2384 = vrot.lane.b32.xlu0 %v1168, 64
  %v2385 = vpop.permute.xlu0 %2384
  %2388 = vrot.lane.b32.xlu0 %v1410, 96
  %v2389 = vpop.permute.xlu0 %2388
  %2392 = vrot.lane.b32.xlu0 %v1894, 32
  %v2393 = vpop.permute.xlu0 %2392
  %2396 = vrot.lane.b32.xlu0 %v2136, 64
  %v2397 = vpop.permute.xlu0 %2396
  %2400 = vrot.lane.b32.xlu0 %v2378, 96
  %v2401 = vpop.permute.xlu0 %2400
  %v2403 = vsel %vm62, %v684, %v2381
  %vm2404 = vcmask 523264
  %v2405 = vsel %vm2404, %v2403, %v2385
  %vm2406 = vcmask 785408
  %v2407 = vsel %vm2406, %v2405, %v2389
  %v2408 = vsel %vm62, %v1652, %v2393
  %v2409 = vsel %vm2404, %v2408, %v2397
  %v2410 = vsel %vm2406, %v2409, %v2401
  %2411 = vst [vmem:[%s12] sm:$0xff] %v2407
  %2412 = vst [vmem:[%s12 + $0x8] sm:$0xff] %v2410
  %2413 = vst.msk [vmem:[%s13] sm:$0xff] %vm62, %v2377
  // Predicated region
  $region50: #{encoder_forward.1} parent=0 // pred_check
    _
  $region51: #{encoder_forward.1} parent=0 // pred_check_branch
    %2415 = sbr.rel (0) target = $region53
  $region52: #{encoder_forward.1} parent=0 // pred_region
    _
  $region53: #{encoder_forward.1} parent=0 // pred_fallthru
    _
  // Predicated region
  $region54: #{encoder_forward.1} parent=0 // pred_check
    _
  $region55: #{encoder_forward.1} parent=0 // pred_check_branch
    %2417 = sbr.rel (0) target = $region57
  $region56: #{encoder_forward.1} parent=0 // pred_region
    _
  $region57: #{encoder_forward.1} parent=0 // pred_fallthru
    _
  // Predicated region
  $region58: #{encoder_forward.1} parent=0 // pred_check
    _
  $region59: #{encoder_forward.1} parent=0 // pred_check_branch
    %2419 = sbr.rel (0) target = $region61
  $region60: #{encoder_forward.1} parent=0 // pred_region
    _
  $region61: #{encoder_forward.1} parent=0 // pred_fallthru
    _
  // Predicated region
  $region62: #{encoder_forward.1} parent=0 // pred_check
    _
  $region63: #{encoder_forward.1} parent=0 // pred_check_branch
    %2421 = sbr.rel (0) target = $region65
  $region64: #{encoder_forward.1} parent=0 // pred_region
    _
  $region65: #{encoder_forward.1} parent=0 // pred_fallthru
    _

</llo_original>
